<compile_context>
chip_gen: v6e
topology: v6e:2x2x1
jax: 0.10.0
libtpu: 0.0.40
codegen_flags: <defaults>
</compile_context>

<pallas_src>
import functools
import numpy as np
import jax
import jax.numpy as jnp
from jax import lax
from jax.experimental import pallas as pl
from jax.experimental.pallas import tpu as pltpu

LN_EPS = 1e-5  # torch nn.LayerNorm default


# --------------------------------------------------------------------------
# sinusoid positional table (numpy, identical math to the torch helper)
# --------------------------------------------------------------------------
def get_sinusoid_encoding_table(n_position, d_hid, padding_idx=None):
    def cal_angle(position, hid_idx):
        return position / np.power(10000, 2 * (hid_idx // 2) / d_hid)

    table = np.array(
        [[cal_angle(p, j) for j in range(d_hid)] for p in range(n_position)],
        dtype=np.float64,
    )
    table[:, 0::2] = np.sin(table[:, 0::2])
    table[:, 1::2] = np.cos(table[:, 1::2])
    if padding_idx is not None:
        table[padding_idx] = 0.0
    return jnp.asarray(table, dtype=jnp.float32)


# --------------------------------------------------------------------------
# kernels
# --------------------------------------------------------------------------
def _layer_norm(x, gamma, beta):
    mean = jnp.mean(x, axis=-1, keepdims=True)
    var = jnp.mean((x - mean) ** 2, axis=-1, keepdims=True)
    return (x - mean) * lax.rsqrt(var + LN_EPS) * gamma + beta


def embed_kernel(src_ref, ew_ref, eb_ref, pos_ref, out_ref):
    # enc = src @ W_emb + b_emb + pos   (per-batch block, f32 matmul: tiny)
    emb = jnp.dot(src_ref[0], ew_ref[...], preferred_element_type=jnp.float32)
    out_ref[0] = emb + eb_ref[...] + pos_ref[...]


def encoder_layers_kernel(enc_ref, wqkv_ref, bqkv_ref, wo_ref, bo_ref,
                          g1_ref, be1_ref, w1_ref, b1_ref, w2_ref, b2_ref,
                          g2_ref, be2_ref, o_ref, act_ref,
                          *, n_head, d_k, d_v):
    layer = pl.program_id(1)
    Dh = n_head * d_k
    Dv = n_head * d_v

    # ---- layer 0: load this batch's embedded sequence into resident scratch
    @pl.when(layer == 0)
    def _():
        act_ref[...] = enc_ref[0]

    x = act_ref[...]                              # [L, D] f32 (resident)
    xb = x.astype(jnp.bfloat16)

    # ---- fused Q|K|V projection: one [L,D]@[D,2*Dh+Dv] matmul --------------
    qkv = jnp.dot(xb, wqkv_ref[0],
                  preferred_element_type=jnp.float32) + bqkv_ref[0]
    qkv_b = qkv.astype(jnp.bfloat16)              # single bf16 cast for all heads
    q = qkv_b[:, :Dh]
    k = qkv_b[:, Dh:2 * Dh]
    v = qkv_b[:, 2 * Dh:2 * Dh + Dv]

    # ---- per-head attention, strictly per batch ([L,L] scores, no bias) ----
    scale = 1.0 / (float(d_k) ** 0.5)
    wo_l = wo_ref[0]                              # bf16 [Dv, D]
    proj = jnp.zeros_like(x)                      # f32 [L, D]
    for h in range(n_head):                       # static unroll
        qh = q[:, h * d_k:(h + 1) * d_k]
        kh = k[:, h * d_k:(h + 1) * d_k]
        vh = v[:, h * d_v:(h + 1) * d_v]
        s = lax.dot_general(qh, kh, (((1,), (1,)), ((), ())),
                            preferred_element_type=jnp.float32) * scale
        s = s - jnp.max(s, axis=-1, keepdims=True)
        p = jnp.exp(s)
        p = p * pl.reciprocal(jnp.sum(p, axis=-1, keepdims=True), approx=True)
        head = jnp.dot(p.astype(jnp.bfloat16), vh,
                       preferred_element_type=jnp.float32)
        # accumulate output projection per head (no concat over heads)
        proj = proj + jnp.dot(head.astype(jnp.bfloat16),
                              wo_l[h * d_v:(h + 1) * d_v, :],
                              preferred_element_type=jnp.float32)

    proj = proj + bo_ref[0]
    y = _layer_norm(proj + x, g1_ref[0], be1_ref[0])

    # ---- position-wise feed-forward (Conv1d k=1 == Linear) -----------------
    h1 = jnp.dot(y.astype(jnp.bfloat16), w1_ref[0],
                 preferred_element_type=jnp.float32) + b1_ref[0]
    h1 = jnp.maximum(h1, 0.0)
    h2 = jnp.dot(h1.astype(jnp.bfloat16), w2_ref[0],
                 preferred_element_type=jnp.float32) + b2_ref[0]
    z = _layer_norm(h2 + y, g2_ref[0], be2_ref[0])

    act_ref[...] = z                              # carry to next layer

    @pl.when(layer == pl.num_programs(1) - 1)
    def _():
        o_ref[0] = z.astype(o_ref.dtype)
    # TODO(synk): dropout is identity in eval mode and slf_attn_mask defaults
    #             to None in the PyTorch forward, so both are omitted.


# --------------------------------------------------------------------------
# wrapper: embedding pallas_call + fused layer pallas_call
# --------------------------------------------------------------------------
def music_encoder_forward(src_seq, packed, cfg):
    B, L, IN = src_seq.shape
    D = cfg["d_model"]
    n_layers = cfg["n_layers"]
    n_head, d_k, d_v = cfg["n_head"], cfg["d_k"], cfg["d_v"]
    Dh, Dv, Dff = n_head * d_k, n_head * d_v, cfg["d_inner"]
    Dqkv = 2 * Dh + Dv

    pos = packed["pos_table"][:L]                 # [L, D], positions 0..L-1

    # ---- stage 1: tiny per-batch embedding kernel --------------------------
    enc = pl.pallas_call(
        embed_kernel,
        out_shape=jax.ShapeDtypeStruct((B, L, D), jnp.float32),
        grid_spec=pltpu.PrefetchScalarGridSpec(
            num_scalar_prefetch=0,
            grid=(B,),
            in_specs=[
                pl.BlockSpec((1, L, IN), lambda b: (b, 0, 0)),   # src
                pl.BlockSpec((IN, D), lambda b: (0, 0)),         # emb_w (f32)
                pl.BlockSpec((1, D), lambda b: (0, 0)),          # emb_b
                pl.BlockSpec((L, D), lambda b: (0, 0)),          # pos[:L]
            ],
            out_specs=pl.BlockSpec((1, L, D), lambda b: (b, 0, 0)),
        ),
        compiler_params=pltpu.CompilerParams(
            dimension_semantics=("parallel",)),
    )(src_seq, packed["emb_w"], packed["emb_b"], pos)

    # ---- stage 2: fused encoder layers, grid=(batch, layer) ----------------
    def batch_blk():
        return pl.BlockSpec((1, L, D), lambda b, l: (b, 0, 0))

    def per_layer(shape):
        return pl.BlockSpec((1,) + shape, lambda b, l: (l, 0, 0))

    kern = functools.partial(encoder_layers_kernel,
                             n_head=n_head, d_k=d_k, d_v=d_v)

    out = pl.pallas_call(
        kern,
        out_shape=jax.ShapeDtypeStruct((B, L, D), jnp.float32),
        grid_spec=pltpu.PrefetchScalarGridSpec(
            num_scalar_prefetch=0,
            grid=(B, n_layers),
            in_specs=[
                batch_blk(),                                  # embedded input
                per_layer((D, Dqkv)), per_layer((1, Dqkv)),   # fused wqkv, bqkv
                per_layer((Dv, D)), per_layer((1, D)),        # wo, bo
                per_layer((1, D)), per_layer((1, D)),         # ln1 gamma, beta
                per_layer((D, Dff)), per_layer((1, Dff)),     # w1, b1
                per_layer((Dff, D)), per_layer((1, D)),       # w2, b2
                per_layer((1, D)), per_layer((1, D)),         # ln2 gamma, beta
            ],
            out_specs=pl.BlockSpec((1, L, D), lambda b, l: (b, 0, 0)),
            scratch_shapes=[pltpu.VMEM((L, D), jnp.float32)],
        ),
        compiler_params=pltpu.CompilerParams(
            # batch axis can be sharded across TensorCores (v7x megacore);
            # the layer axis is a sequential carry.
            dimension_semantics=("parallel", "arbitrary"),
            # explicit scoped-VMEM budget with headroom; re-derive for larger
            # configs (v7x has 64 MiB physical VMEM per core).
            vmem_limit_bytes=64 * 1024 * 1024),
        # NOTE: if weight DMA shows up exposed on v5e, add
        #       pipeline_mode=pl.Buffered(3) to the w1/w2 BlockSpecs.
    )(enc, packed["wqkv"], packed["bqkv"], packed["wo"], packed["bo"],
      packed["g1"], packed["be1"], packed["w1"], packed["b1"],
      packed["w2"], packed["b2"], packed["g2"], packed["be2"])

    return out


# --------------------------------------------------------------------------
# parameter init (f32 master copy) + packing for the kernel (stack + bf16)
# --------------------------------------------------------------------------
def init_params(key, cfg):
    def dense(k, din, dout, scale=0.05):
        kw, kb = jax.random.split(k)
        return (scale * jax.random.normal(kw, (din, dout), jnp.float32),
                scale * jax.random.normal(kb, (1, dout), jnp.float32))

    D, IN = cfg["d_model"], cfg["input_size"]
    Dh = cfg["n_head"] * cfg["d_k"]
    Dv = cfg["n_head"] * cfg["d_v"]
    Dff = cfg["d_inner"]

    keys = jax.random.split(key, 1 + cfg["n_layers"])
    emb_w, emb_b = dense(keys[0], IN, D)

    layers = []
    for li in range(cfg["n_layers"]):
        ks = jax.random.split(keys[1 + li], 10)
        wq, bq = dense(ks[0], D, Dh)
        wk, bk = dense(ks[1], D, Dh)
        wv, bv = dense(ks[2], D, Dv)
        wo, bo = dense(ks[3], Dv, D)
        w1, b1 = dense(ks[4], D, Dff)
        w2, b2 = dense(ks[5], Dff, D)
        g1 = 1.0 + 0.1 * jax.random.normal(ks[6], (1, D), jnp.float32)
        be1 = 0.1 * jax.random.normal(ks[7], (1, D), jnp.float32)
        g2 = 1.0 + 0.1 * jax.random.normal(ks[8], (1, D), jnp.float32)
        be2 = 0.1 * jax.random.normal(ks[9], (1, D), jnp.float32)
        layers.append(dict(wq=wq, bq=bq, wk=wk, bk=bk, wv=wv, bv=bv,
                           wo=wo, bo=bo, g1=g1, be1=be1,
                           w1=w1, b1=b1, w2=w2, b2=b2, g2=g2, be2=be2))

    pos_table = get_sinusoid_encoding_table(cfg["max_seq_len"] + 1, D,
                                            padding_idx=0)
    return dict(emb_w=emb_w, emb_b=emb_b, pos_table=pos_table, layers=layers)


def pack_params(params):
    """Stack per-layer params along a leading n_layers axis; fuse Q|K|V;
    weight matrices -> bf16 (biases / LN params stay f32)."""
    bf = jnp.bfloat16

    def stack(name, dtype=None):
        arr = jnp.stack([lp[name] for lp in params["layers"]])
        return arr.astype(dtype) if dtype is not None else arr

    wqkv = jnp.stack([jnp.concatenate([lp["wq"], lp["wk"], lp["wv"]], axis=1)
                      for lp in params["layers"]]).astype(bf)
    bqkv = jnp.stack([jnp.concatenate([lp["bq"], lp["bk"], lp["bv"]], axis=1)
                      for lp in params["layers"]])

    return dict(
        emb_w=params["emb_w"],            # f32: embedding is its own tiny kernel
        emb_b=params["emb_b"],
        pos_table=params["pos_table"],
        wqkv=wqkv, bqkv=bqkv,
        wo=stack("wo", bf), bo=stack("bo"),
        g1=stack("g1"), be1=stack("be1"),
        w1=stack("w1", bf), b1=stack("b1"),
        w2=stack("w2", bf), b2=stack("b2"),
        g2=stack("g2"), be2=stack("be2"),
    )


# --------------------------------------------------------------------------
# pure-JAX f32 reference (mirrors the PyTorch forward, eval mode)
# --------------------------------------------------------------------------
def _ref_ln(x, g, b):
    m = jnp.mean(x, axis=-1, keepdims=True)
    v = jnp.mean((x - m) ** 2, axis=-1, keepdims=True)
    return (x - m) / jnp.sqrt(v + LN_EPS) * g + b


def reference_forward(src_seq, params, cfg):
    n_head, d_k, d_v = cfg["n_head"], cfg["d_k"], cfg["d_v"]
    B, L, _ = src_seq.shape
    y = src_seq @ params["emb_w"] + params["emb_b"] + params["pos_table"][:L][None]
    for p in params["layers"]:
        q = (y @ p["wq"] + p["bq"]).reshape(B, L, n_head, d_k).transpose(0, 2, 1, 3)
        k = (y @ p["wk"] + p["bk"]).reshape(B, L, n_head, d_k).transpose(0, 2, 1, 3)
        v = (y @ p["wv"] + p["bv"]).reshape(B, L, n_head, d_v).transpose(0, 2, 1, 3)
        s = jnp.einsum("bhqd,bhkd->bhqk", q, k) / np.sqrt(d_k)
        a = jax.nn.softmax(s, axis=-1)
        o = jnp.einsum("bhqk,bhkd->bhqd", a, v).transpose(0, 2, 1, 3).reshape(B, L, -1)
        y = _ref_ln(o @ p["wo"] + p["bo"] + y, p["g1"], p["be1"])
        h = jax.nn.relu(y @ p["w1"] + p["b1"])
        y = _ref_ln(h @ p["w2"] + p["b2"] + y, p["g2"], p["be2"])
    return y


# --------------------------------------------------------------------------
if __name__ == "__main__":
    cfg = dict(
        max_seq_len=16,
        input_size=32,
        d_model=128,       # d_word_vec == d_model
        n_layers=3,
        n_head=4,
        d_k=32,
        d_v=32,
        d_inner=256,
    )
    B, L = 2, 8

    key = jax.random.PRNGKey(0)
    k_x, k_p = jax.random.split(key)
    src_seq = jax.random.normal(k_x, (B, L, cfg["input_size"]), jnp.float32)
    params = init_params(k_p, cfg)
    packed = pack_params(params)

    fwd = jax.jit(functools.partial(music_encoder_forward, cfg=cfg))
    out = jax.block_until_ready(fwd(src_seq, packed))

    ref = jax.block_until_ready(reference_forward(src_seq, params, cfg))

    assert out.shape == (B, L, cfg["d_model"])
    # Tolerance reflects bf16 MXU operands over 3 layers (reference is pure f32).
    np.testing.assert_allclose(np.asarray(out), np.asarray(ref),
                               rtol=5e-2, atol=5e-2)
    print("KERNEL_OK")
</pallas_src>

<mosaic_0001>
module attributes {stable_mosaic.version = 11 : i64} {
  func.func @embed_kernel(%arg0: i32, %arg1: memref<1x8x32xf32, #tpu.memory_space<vmem>>, %arg2: memref<32x128xf32, #tpu.memory_space<vmem>>, %arg3: memref<1x128xf32, #tpu.memory_space<vmem>>, %arg4: memref<8x128xf32, #tpu.memory_space<vmem>>, %arg5: memref<1x8x128xf32, #tpu.memory_space<vmem>>) attributes {dimension_semantics = [#tpu.dimension_semantics<parallel>], iteration_bounds = array<i64: 2>, scalar_prefetch = 0 : i64, scratch_operands = 0 : i64, tpu.core_type = #tpu.core_type<tc>, window_params = [{transform_indices = @transform_0, window_bounds = array<i64: 1, 8, 32>}, {pipeline_mode = #tpu.pipeline_mode<synchronous>, transform_indices = @transform_1, window_bounds = array<i64: 32, 128>}, {pipeline_mode = #tpu.pipeline_mode<synchronous>, transform_indices = @transform_2, window_bounds = array<i64: 1, 128>}, {pipeline_mode = #tpu.pipeline_mode<synchronous>, transform_indices = @transform_3, window_bounds = array<i64: 8, 128>}, {transform_indices = @transform_4, window_bounds = array<i64: 1, 8, 128>}]} {
    %c0 = arith.constant 0 : index
    %c0_0 = arith.constant 0 : index
    %c0_1 = arith.constant 0 : index
    %0 = vector.load %arg1[%c0, %c0_0, %c0_1] : memref<1x8x32xf32, #tpu.memory_space<vmem>>, vector<1x8x32xf32>
    %1 = vector.shape_cast %0 : vector<1x8x32xf32> to vector<8x32xf32>
    %c0_2 = arith.constant 0 : index
    %c0_3 = arith.constant 0 : index
    %2 = vector.load %arg2[%c0_2, %c0_3] : memref<32x128xf32, #tpu.memory_space<vmem>>, vector<32x128xf32>
    %cst = arith.constant dense<0.000000e+00> : vector<8x128xf32>
    %3 = tpu.matmul %1, %2, %cst {dimension_numbers = #tpu.dot_dimension_numbers<[1], [0], [0], [1], [0, 0, 1, 1], [], []>} : vector<8x32xf32>, vector<32x128xf32>, vector<8x128xf32> -> vector<8x128xf32>
    %c0_4 = arith.constant 0 : index
    %c0_5 = arith.constant 0 : index
    %4 = vector.load %arg3[%c0_4, %c0_5] : memref<1x128xf32, #tpu.memory_space<vmem>>, vector<1x128xf32>
    %5 = vector.broadcast %4 : vector<1x128xf32> to vector<8x128xf32>
    %6 = arith.addf %3, %5 : vector<8x128xf32>
    %c0_6 = arith.constant 0 : index
    %c0_7 = arith.constant 0 : index
    %7 = vector.load %arg4[%c0_6, %c0_7] : memref<8x128xf32, #tpu.memory_space<vmem>>, vector<8x128xf32>
    %8 = arith.addf %6, %7 : vector<8x128xf32>
    %c0_8 = arith.constant 0 : index
    %c0_9 = arith.constant 0 : index
    %c0_10 = arith.constant 0 : index
    %9 = vector.load %arg5[%c0_8, %c0_9, %c0_10] : memref<1x8x128xf32, #tpu.memory_space<vmem>>, vector<1x8x128xf32>
    %10 = vector.shape_cast %9 : vector<1x8x128xf32> to vector<8x128xf32>
    %11 = vector.shape_cast %8 : vector<8x128xf32> to vector<1x8x128xf32>
    tpu.vector_store %arg5[%c0_8, %c0_9, %c0_10], %11 {strides = array<i32>} : memref<1x8x128xf32, #tpu.memory_space<vmem>>, vector<1x8x128xf32>,
    return
  }
  func.func @transform_0(%arg0: i32) -> (i32, i32, i32) {
    %c0_i32 = arith.constant 0 : i32
    %c0_i32_0 = arith.constant 0 : i32
    %c0_i32_1 = arith.constant 0 : i32
    return %arg0, %c0_i32, %c0_i32_0 : i32, i32, i32
  }
  func.func @transform_1(%arg0: i32) -> (i32, i32) {
    %c0_i32 = arith.constant 0 : i32
    %c0_i32_0 = arith.constant 0 : i32
    %c0_i32_1 = arith.constant 0 : i32
    return %c0_i32, %c0_i32_0 : i32, i32
  }
  func.func @transform_2(%arg0: i32) -> (i32, i32) {
    %c0_i32 = arith.constant 0 : i32
    %c0_i32_0 = arith.constant 0 : i32
    %c0_i32_1 = arith.constant 0 : i32
    return %c0_i32, %c0_i32_0 : i32, i32
  }
  func.func @transform_3(%arg0: i32) -> (i32, i32) {
    %c0_i32 = arith.constant 0 : i32
    %c0_i32_0 = arith.constant 0 : i32
    %c0_i32_1 = arith.constant 0 : i32
    return %c0_i32, %c0_i32_0 : i32, i32
  }
  func.func @transform_4(%arg0: i32) -> (i32, i32, i32) {
    %c0_i32 = arith.constant 0 : i32
    %c0_i32_0 = arith.constant 0 : i32
    %c0_i32_1 = arith.constant 0 : i32
    return %arg0, %c0_i32, %c0_i32_0 : i32, i32, i32
  }
}

module attributes {stable_mosaic.version = 11 : i64} {
  func.func @encoder_layers_kernel(%arg0: i32, %arg1: i32, %arg2: memref<1x8x128xf32, #tpu.memory_space<vmem>>, %arg3: memref<1x128x384xbf16, #tpu.memory_space<vmem>>, %arg4: memref<1x1x384xf32, #tpu.memory_space<vmem>>, %arg5: memref<1x128x128xbf16, #tpu.memory_space<vmem>>, %arg6: memref<1x1x128xf32, #tpu.memory_space<vmem>>, %arg7: memref<1x1x128xf32, #tpu.memory_space<vmem>>, %arg8: memref<1x1x128xf32, #tpu.memory_space<vmem>>, %arg9: memref<1x128x256xbf16, #tpu.memory_space<vmem>>, %arg10: memref<1x1x256xf32, #tpu.memory_space<vmem>>, %arg11: memref<1x256x128xbf16, #tpu.memory_space<vmem>>, %arg12: memref<1x1x128xf32, #tpu.memory_space<vmem>>, %arg13: memref<1x1x128xf32, #tpu.memory_space<vmem>>, %arg14: memref<1x1x128xf32, #tpu.memory_space<vmem>>, %arg15: memref<1x8x128xf32, #tpu.memory_space<vmem>>, %arg16: memref<8x128xf32, #tpu.memory_space<vmem>>) attributes {dimension_semantics = [#tpu.dimension_semantics<parallel>, #tpu.dimension_semantics<arbitrary>], iteration_bounds = array<i64: 2, 3>, scalar_prefetch = 0 : i64, scratch_operands = 1 : i64, tpu.core_type = #tpu.core_type<tc>, window_params = [{transform_indices = @transform_0, window_bounds = array<i64: 1, 8, 128>}, {transform_indices = @transform_1, window_bounds = array<i64: 1, 128, 384>}, {transform_indices = @transform_2, window_bounds = array<i64: 1, 1, 384>}, {transform_indices = @transform_3, window_bounds = array<i64: 1, 128, 128>}, {transform_indices = @transform_4, window_bounds = array<i64: 1, 1, 128>}, {transform_indices = @transform_5, window_bounds = array<i64: 1, 1, 128>}, {transform_indices = @transform_6, window_bounds = array<i64: 1, 1, 128>}, {transform_indices = @transform_7, window_bounds = array<i64: 1, 128, 256>}, {transform_indices = @transform_8, window_bounds = array<i64: 1, 1, 256>}, {transform_indices = @transform_9, window_bounds = array<i64: 1, 256, 128>}, {transform_indices = @transform_10, window_bounds = array<i64: 1, 1, 128>}, {transform_indices = @transform_11, window_bounds = array<i64: 1, 1, 128>}, {transform_indices = @transform_12, window_bounds = array<i64: 1, 1, 128>}, {transform_indices = @transform_13, window_bounds = array<i64: 1, 8, 128>}]} {
    %c0_i32 = arith.constant 0 : i32
    %0 = arith.cmpi eq, %arg1, %c0_i32 : i32
    %1 = arith.extui %0 : i1 to i32
    %c0_i32_0 = arith.constant 0 : i32
    %2 = arith.cmpi ne, %1, %c0_i32_0 : i32
    scf.if %2 {
      %c0_79 = arith.constant 0 : index
      %c0_80 = arith.constant 0 : index
      %c0_81 = arith.constant 0 : index
      %187 = vector.load %arg2[%c0_79, %c0_80, %c0_81] : memref<1x8x128xf32, #tpu.memory_space<vmem>>, vector<1x8x128xf32>
      %188 = vector.shape_cast %187 : vector<1x8x128xf32> to vector<8x128xf32>
      %c0_82 = arith.constant 0 : index
      %c0_83 = arith.constant 0 : index
      %189 = vector.load %arg16[%c0_82, %c0_83] : memref<8x128xf32, #tpu.memory_space<vmem>>, vector<8x128xf32>
      tpu.vector_store %arg16[%c0_82, %c0_83], %188 {strides = array<i32>} : memref<8x128xf32, #tpu.memory_space<vmem>>, vector<8x128xf32>,
    } else {
    }
    %c0 = arith.constant 0 : index
    %c0_1 = arith.constant 0 : index
    %3 = vector.load %arg16[%c0, %c0_1] : memref<8x128xf32, #tpu.memory_space<vmem>>, vector<8x128xf32>
    %4 = arith.truncf %3 : vector<8x128xf32> to vector<8x128xbf16>
    %c0_2 = arith.constant 0 : index
    %c0_3 = arith.constant 0 : index
    %c0_4 = arith.constant 0 : index
    %5 = vector.load %arg3[%c0_2, %c0_3, %c0_4] : memref<1x128x384xbf16, #tpu.memory_space<vmem>>, vector<1x128x384xbf16>
    %6 = vector.shape_cast %5 : vector<1x128x384xbf16> to vector<128x384xbf16>
    %cst = arith.constant dense<0.000000e+00> : vector<8x384xf32>
    %7 = tpu.matmul %4, %6, %cst {dimension_numbers = #tpu.dot_dimension_numbers<[1], [0], [0], [1], [0, 0, 1, 1], [], []>} : vector<8x128xbf16>, vector<128x384xbf16>, vector<8x384xf32> -> vector<8x384xf32>
    %c0_5 = arith.constant 0 : index
    %c0_6 = arith.constant 0 : index
    %c0_7 = arith.constant 0 : index
    %8 = vector.load %arg4[%c0_5, %c0_6, %c0_7] : memref<1x1x384xf32, #tpu.memory_space<vmem>>, vector<1x1x384xf32>
    %9 = vector.shape_cast %8 : vector<1x1x384xf32> to vector<1x384xf32>
    %10 = vector.broadcast %9 : vector<1x384xf32> to vector<8x384xf32>
    %11 = arith.addf %7, %10 : vector<8x384xf32>
    %12 = arith.truncf %11 : vector<8x384xf32> to vector<8x384xbf16>
    %13 = vector.extract_strided_slice %12 {offsets = [0, 0], sizes = [8, 128], strides = [1, 1]} : vector<8x384xbf16> to vector<8x128xbf16>
    %14 = vector.extract_strided_slice %12 {offsets = [0, 128], sizes = [8, 128], strides = [1, 1]} : vector<8x384xbf16> to vector<8x128xbf16>
    %15 = vector.extract_strided_slice %12 {offsets = [0, 256], sizes = [8, 128], strides = [1, 1]} : vector<8x384xbf16> to vector<8x128xbf16>
    %c0_8 = arith.constant 0 : index
    %c0_9 = arith.constant 0 : index
    %c0_10 = arith.constant 0 : index
    %16 = vector.load %arg5[%c0_8, %c0_9, %c0_10] : memref<1x128x128xbf16, #tpu.memory_space<vmem>>, vector<1x128x128xbf16>
    %17 = vector.shape_cast %16 : vector<1x128x128xbf16> to vector<128x128xbf16>
    %cst_11 = arith.constant 0.000000e+00 : f32
    %18 = vector.broadcast %cst_11 : f32 to vector<8x128xf32>
    %19 = vector.extract_strided_slice %13 {offsets = [0, 0], sizes = [8, 32], strides = [1, 1]} : vector<8x128xbf16> to vector<8x32xbf16>
    %20 = vector.extract_strided_slice %14 {offsets = [0, 0], sizes = [8, 32], strides = [1, 1]} : vector<8x128xbf16> to vector<8x32xbf16>
    %21 = vector.extract_strided_slice %15 {offsets = [0, 0], sizes = [8, 32], strides = [1, 1]} : vector<8x128xbf16> to vector<8x32xbf16>
    %cst_12 = arith.constant dense<0.000000e+00> : vector<8x8xf32>
    %22 = tpu.matmul %19, %20, %cst_12 {dimension_numbers = #tpu.dot_dimension_numbers<[1], [1], [0], [0], [0, 0, 1, 0], [], []>} : vector<8x32xbf16>, vector<8x32xbf16>, vector<8x8xf32> -> vector<8x8xf32>
    %cst_13 = arith.constant 0.176776692 : f32
    %23 = vector.broadcast %cst_13 : f32 to vector<8x8xf32>
    %24 = arith.mulf %22, %23 : vector<8x8xf32>
    %cst_14 = arith.constant dense<0xFF800000> : vector<8xf32>
    %25 = vector.multi_reduction <maximumf>, %24, %cst_14 [1] : vector<8x8xf32> to vector<8xf32>
    %26 = vector.shape_cast %25 : vector<8xf32> to vector<8x1xf32>
    %27 = vector.broadcast %26 : vector<8x1xf32> to vector<8x8xf32>
    %28 = arith.subf %24, %27 : vector<8x8xf32>
    %29 = math.exp %28 : vector<8x8xf32>
    %cst_15 = arith.constant dense<0.000000e+00> : vector<8xf32>
    %30 = vector.multi_reduction <add>, %29, %cst_15 [1] : vector<8x8xf32> to vector<8xf32>
    %31 = vector.shape_cast %30 : vector<8xf32> to vector<8x1xf32>
    %32 = tpu.reciprocal %31 {approx = true} : vector<8x1xf32> -> vector<8x1xf32>
    %33 = vector.broadcast %32 : vector<8x1xf32> to vector<8x8xf32>
    %34 = arith.mulf %29, %33 : vector<8x8xf32>
    %35 = arith.truncf %34 : vector<8x8xf32> to vector<8x8xbf16>
    %cst_16 = arith.constant dense<0.000000e+00> : vector<8x32xf32>
    %36 = tpu.matmul %35, %21, %cst_16 {dimension_numbers = #tpu.dot_dimension_numbers<[1], [0], [0], [1], [0, 0, 1, 1], [], []>} : vector<8x8xbf16>, vector<8x32xbf16>, vector<8x32xf32> -> vector<8x32xf32>
    %37 = arith.truncf %36 : vector<8x32xf32> to vector<8x32xbf16>
    %38 = vector.extract_strided_slice %17 {offsets = [0, 0], sizes = [32, 128], strides = [1, 1]} : vector<128x128xbf16> to vector<32x128xbf16>
    %cst_17 = arith.constant dense<0.000000e+00> : vector<8x128xf32>
    %39 = tpu.matmul %37, %38, %cst_17 {dimension_numbers = #tpu.dot_dimension_numbers<[1], [0], [0], [1], [0, 0, 1, 1], [], []>} : vector<8x32xbf16>, vector<32x128xbf16>, vector<8x128xf32> -> vector<8x128xf32>
    %40 = arith.addf %18, %39 : vector<8x128xf32>
    %41 = vector.extract_strided_slice %13 {offsets = [0, 32], sizes = [8, 32], strides = [1, 1]} : vector<8x128xbf16> to vector<8x32xbf16>
    %42 = vector.extract_strided_slice %14 {offsets = [0, 32], sizes = [8, 32], strides = [1, 1]} : vector<8x128xbf16> to vector<8x32xbf16>
    %43 = vector.extract_strided_slice %15 {offsets = [0, 32], sizes = [8, 32], strides = [1, 1]} : vector<8x128xbf16> to vector<8x32xbf16>
    %cst_18 = arith.constant dense<0.000000e+00> : vector<8x8xf32>
    %44 = tpu.matmul %41, %42, %cst_18 {dimension_numbers = #tpu.dot_dimension_numbers<[1], [1], [0], [0], [0, 0, 1, 0], [], []>} : vector<8x32xbf16>, vector<8x32xbf16>, vector<8x8xf32> -> vector<8x8xf32>
    %cst_19 = arith.constant 0.176776692 : f32
    %45 = vector.broadcast %cst_19 : f32 to vector<8x8xf32>
    %46 = arith.mulf %44, %45 : vector<8x8xf32>
    %cst_20 = arith.constant dense<0xFF800000> : vector<8xf32>
    %47 = vector.multi_reduction <maximumf>, %46, %cst_20 [1] : vector<8x8xf32> to vector<8xf32>
    %48 = vector.shape_cast %47 : vector<8xf32> to vector<8x1xf32>
    %49 = vector.broadcast %48 : vector<8x1xf32> to vector<8x8xf32>
    %50 = arith.subf %46, %49 : vector<8x8xf32>
    %51 = math.exp %50 : vector<8x8xf32>
    %cst_21 = arith.constant dense<0.000000e+00> : vector<8xf32>
    %52 = vector.multi_reduction <add>, %51, %cst_21 [1] : vector<8x8xf32> to vector<8xf32>
    %53 = vector.shape_cast %52 : vector<8xf32> to vector<8x1xf32>
    %54 = tpu.reciprocal %53 {approx = true} : vector<8x1xf32> -> vector<8x1xf32>
    %55 = vector.broadcast %54 : vector<8x1xf32> to vector<8x8xf32>
    %56 = arith.mulf %51, %55 : vector<8x8xf32>
    %57 = arith.truncf %56 : vector<8x8xf32> to vector<8x8xbf16>
    %cst_22 = arith.constant dense<0.000000e+00> : vector<8x32xf32>
    %58 = tpu.matmul %57, %43, %cst_22 {dimension_numbers = #tpu.dot_dimension_numbers<[1], [0], [0], [1], [0, 0, 1, 1], [], []>} : vector<8x8xbf16>, vector<8x32xbf16>, vector<8x32xf32> -> vector<8x32xf32>
    %59 = arith.truncf %58 : vector<8x32xf32> to vector<8x32xbf16>
    %60 = vector.extract_strided_slice %17 {offsets = [32, 0], sizes = [32, 128], strides = [1, 1]} : vector<128x128xbf16> to vector<32x128xbf16>
    %cst_23 = arith.constant dense<0.000000e+00> : vector<8x128xf32>
    %61 = tpu.matmul %59, %60, %cst_23 {dimension_numbers = #tpu.dot_dimension_numbers<[1], [0], [0], [1], [0, 0, 1, 1], [], []>} : vector<8x32xbf16>, vector<32x128xbf16>, vector<8x128xf32> -> vector<8x128xf32>
    %62 = arith.addf %40, %61 : vector<8x128xf32>
    %63 = vector.extract_strided_slice %13 {offsets = [0, 64], sizes = [8, 32], strides = [1, 1]} : vector<8x128xbf16> to vector<8x32xbf16>
    %64 = vector.extract_strided_slice %14 {offsets = [0, 64], sizes = [8, 32], strides = [1, 1]} : vector<8x128xbf16> to vector<8x32xbf16>
    %65 = vector.extract_strided_slice %15 {offsets = [0, 64], sizes = [8, 32], strides = [1, 1]} : vector<8x128xbf16> to vector<8x32xbf16>
    %cst_24 = arith.constant dense<0.000000e+00> : vector<8x8xf32>
    %66 = tpu.matmul %63, %64, %cst_24 {dimension_numbers = #tpu.dot_dimension_numbers<[1], [1], [0], [0], [0, 0, 1, 0], [], []>} : vector<8x32xbf16>, vector<8x32xbf16>, vector<8x8xf32> -> vector<8x8xf32>
    %cst_25 = arith.constant 0.176776692 : f32
    %67 = vector.broadcast %cst_25 : f32 to vector<8x8xf32>
    %68 = arith.mulf %66, %67 : vector<8x8xf32>
    %cst_26 = arith.constant dense<0xFF800000> : vector<8xf32>
    %69 = vector.multi_reduction <maximumf>, %68, %cst_26 [1] : vector<8x8xf32> to vector<8xf32>
    %70 = vector.shape_cast %69 : vector<8xf32> to vector<8x1xf32>
    %71 = vector.broadcast %70 : vector<8x1xf32> to vector<8x8xf32>
    %72 = arith.subf %68, %71 : vector<8x8xf32>
    %73 = math.exp %72 : vector<8x8xf32>
    %cst_27 = arith.constant dense<0.000000e+00> : vector<8xf32>
    %74 = vector.multi_reduction <add>, %73, %cst_27 [1] : vector<8x8xf32> to vector<8xf32>
    %75 = vector.shape_cast %74 : vector<8xf32> to vector<8x1xf32>
    %76 = tpu.reciprocal %75 {approx = true} : vector<8x1xf32> -> vector<8x1xf32>
    %77 = vector.broadcast %76 : vector<8x1xf32> to vector<8x8xf32>
    %78 = arith.mulf %73, %77 : vector<8x8xf32>
    %79 = arith.truncf %78 : vector<8x8xf32> to vector<8x8xbf16>
    %cst_28 = arith.constant dense<0.000000e+00> : vector<8x32xf32>
    %80 = tpu.matmul %79, %65, %cst_28 {dimension_numbers = #tpu.dot_dimension_numbers<[1], [0], [0], [1], [0, 0, 1, 1], [], []>} : vector<8x8xbf16>, vector<8x32xbf16>, vector<8x32xf32> -> vector<8x32xf32>
    %81 = arith.truncf %80 : vector<8x32xf32> to vector<8x32xbf16>
    %82 = vector.extract_strided_slice %17 {offsets = [64, 0], sizes = [32, 128], strides = [1, 1]} : vector<128x128xbf16> to vector<32x128xbf16>
    %cst_29 = arith.constant dense<0.000000e+00> : vector<8x128xf32>
    %83 = tpu.matmul %81, %82, %cst_29 {dimension_numbers = #tpu.dot_dimension_numbers<[1], [0], [0], [1], [0, 0, 1, 1], [], []>} : vector<8x32xbf16>, vector<32x128xbf16>, vector<8x128xf32> -> vector<8x128xf32>
    %84 = arith.addf %62, %83 : vector<8x128xf32>
    %85 = vector.extract_strided_slice %13 {offsets = [0, 96], sizes = [8, 32], strides = [1, 1]} : vector<8x128xbf16> to vector<8x32xbf16>
    %86 = vector.extract_strided_slice %14 {offsets = [0, 96], sizes = [8, 32], strides = [1, 1]} : vector<8x128xbf16> to vector<8x32xbf16>
    %87 = vector.extract_strided_slice %15 {offsets = [0, 96], sizes = [8, 32], strides = [1, 1]} : vector<8x128xbf16> to vector<8x32xbf16>
    %cst_30 = arith.constant dense<0.000000e+00> : vector<8x8xf32>
    %88 = tpu.matmul %85, %86, %cst_30 {dimension_numbers = #tpu.dot_dimension_numbers<[1], [1], [0], [0], [0, 0, 1, 0], [], []>} : vector<8x32xbf16>, vector<8x32xbf16>, vector<8x8xf32> -> vector<8x8xf32>
    %cst_31 = arith.constant 0.176776692 : f32
    %89 = vector.broadcast %cst_31 : f32 to vector<8x8xf32>
    %90 = arith.mulf %88, %89 : vector<8x8xf32>
    %cst_32 = arith.constant dense<0xFF800000> : vector<8xf32>
    %91 = vector.multi_reduction <maximumf>, %90, %cst_32 [1] : vector<8x8xf32> to vector<8xf32>
    %92 = vector.shape_cast %91 : vector<8xf32> to vector<8x1xf32>
    %93 = vector.broadcast %92 : vector<8x1xf32> to vector<8x8xf32>
    %94 = arith.subf %90, %93 : vector<8x8xf32>
    %95 = math.exp %94 : vector<8x8xf32>
    %cst_33 = arith.constant dense<0.000000e+00> : vector<8xf32>
    %96 = vector.multi_reduction <add>, %95, %cst_33 [1] : vector<8x8xf32> to vector<8xf32>
    %97 = vector.shape_cast %96 : vector<8xf32> to vector<8x1xf32>
    %98 = tpu.reciprocal %97 {approx = true} : vector<8x1xf32> -> vector<8x1xf32>
    %99 = vector.broadcast %98 : vector<8x1xf32> to vector<8x8xf32>
    %100 = arith.mulf %95, %99 : vector<8x8xf32>
    %101 = arith.truncf %100 : vector<8x8xf32> to vector<8x8xbf16>
    %cst_34 = arith.constant dense<0.000000e+00> : vector<8x32xf32>
    %102 = tpu.matmul %101, %87, %cst_34 {dimension_numbers = #tpu.dot_dimension_numbers<[1], [0], [0], [1], [0, 0, 1, 1], [], []>} : vector<8x8xbf16>, vector<8x32xbf16>, vector<8x32xf32> -> vector<8x32xf32>
    %103 = arith.truncf %102 : vector<8x32xf32> to vector<8x32xbf16>
    %104 = vector.extract_strided_slice %17 {offsets = [96, 0], sizes = [32, 128], strides = [1, 1]} : vector<128x128xbf16> to vector<32x128xbf16>
    %cst_35 = arith.constant dense<0.000000e+00> : vector<8x128xf32>
    %105 = tpu.matmul %103, %104, %cst_35 {dimension_numbers = #tpu.dot_dimension_numbers<[1], [0], [0], [1], [0, 0, 1, 1], [], []>} : vector<8x32xbf16>, vector<32x128xbf16>, vector<8x128xf32> -> vector<8x128xf32>
    %106 = arith.addf %84, %105 : vector<8x128xf32>
    %c0_36 = arith.constant 0 : index
    %c0_37 = arith.constant 0 : index
    %c0_38 = arith.constant 0 : index
    %107 = vector.load %arg6[%c0_36, %c0_37, %c0_38] : memref<1x1x128xf32, #tpu.memory_space<vmem>>, vector<1x1x128xf32>
    %108 = vector.shape_cast %107 : vector<1x1x128xf32> to vector<1x128xf32>
    %109 = vector.broadcast %108 : vector<1x128xf32> to vector<8x128xf32>
    %110 = arith.addf %106, %109 : vector<8x128xf32>
    %111 = arith.addf %110, %3 : vector<8x128xf32>
    %c0_39 = arith.constant 0 : index
    %c0_40 = arith.constant 0 : index
    %c0_41 = arith.constant 0 : index
    %112 = vector.load %arg7[%c0_39, %c0_40, %c0_41] : memref<1x1x128xf32, #tpu.memory_space<vmem>>, vector<1x1x128xf32>
    %113 = vector.shape_cast %112 : vector<1x1x128xf32> to vector<1x128xf32>
    %c0_42 = arith.constant 0 : index
    %c0_43 = arith.constant 0 : index
    %c0_44 = arith.constant 0 : index
    %114 = vector.load %arg8[%c0_42, %c0_43, %c0_44] : memref<1x1x128xf32, #tpu.memory_space<vmem>>, vector<1x1x128xf32>
    %115 = vector.shape_cast %114 : vector<1x1x128xf32> to vector<1x128xf32>
    %cst_45 = arith.constant dense<0.000000e+00> : vector<8xf32>
    %116 = vector.multi_reduction <add>, %111, %cst_45 [1] : vector<8x128xf32> to vector<8xf32>
    %117 = vector.shape_cast %116 : vector<8xf32> to vector<8x1xf32>
    %cst_46 = arith.constant 1.280000e+02 : f32
    %118 = vector.broadcast %cst_46 : f32 to vector<8x1xf32>
    %119 = arith.divf %117, %118 : vector<8x1xf32>
    %120 = vector.broadcast %119 : vector<8x1xf32> to vector<8x128xf32>
    %121 = arith.subf %111, %120 : vector<8x128xf32>
    %122 = arith.mulf %121, %121 : vector<8x128xf32>
    %cst_47 = arith.constant dense<0.000000e+00> : vector<8xf32>
    %123 = vector.multi_reduction <add>, %122, %cst_47 [1] : vector<8x128xf32> to vector<8xf32>
    %124 = vector.shape_cast %123 : vector<8xf32> to vector<8x1xf32>
    %cst_48 = arith.constant 1.280000e+02 : f32
    %125 = vector.broadcast %cst_48 : f32 to vector<8x1xf32>
    %126 = arith.divf %124, %125 : vector<8x1xf32>
    %127 = vector.broadcast %119 : vector<8x1xf32> to vector<8x128xf32>
    %128 = arith.subf %111, %127 : vector<8x128xf32>
    %cst_49 = arith.constant 9.99999974E-6 : f32
    %129 = vector.broadcast %cst_49 : f32 to vector<8x1xf32>
    %130 = arith.addf %126, %129 : vector<8x1xf32>
    %131 = math.rsqrt %130 : vector<8x1xf32>
    %132 = vector.broadcast %131 : vector<8x1xf32> to vector<8x128xf32>
    %133 = arith.mulf %128, %132 : vector<8x128xf32>
    %134 = vector.broadcast %113 : vector<1x128xf32> to vector<8x128xf32>
    %135 = arith.mulf %133, %134 : vector<8x128xf32>
    %136 = vector.broadcast %115 : vector<1x128xf32> to vector<8x128xf32>
    %137 = arith.addf %135, %136 : vector<8x128xf32>
    %138 = arith.truncf %137 : vector<8x128xf32> to vector<8x128xbf16>
    %c0_50 = arith.constant 0 : index
    %c0_51 = arith.constant 0 : index
    %c0_52 = arith.constant 0 : index
    %139 = vector.load %arg9[%c0_50, %c0_51, %c0_52] : memref<1x128x256xbf16, #tpu.memory_space<vmem>>, vector<1x128x256xbf16>
    %140 = vector.shape_cast %139 : vector<1x128x256xbf16> to vector<128x256xbf16>
    %cst_53 = arith.constant dense<0.000000e+00> : vector<8x256xf32>
    %141 = tpu.matmul %138, %140, %cst_53 {dimension_numbers = #tpu.dot_dimension_numbers<[1], [0], [0], [1], [0, 0, 1, 1], [], []>} : vector<8x128xbf16>, vector<128x256xbf16>, vector<8x256xf32> -> vector<8x256xf32>
    %c0_54 = arith.constant 0 : index
    %c0_55 = arith.constant 0 : index
    %c0_56 = arith.constant 0 : index
    %142 = vector.load %arg10[%c0_54, %c0_55, %c0_56] : memref<1x1x256xf32, #tpu.memory_space<vmem>>, vector<1x1x256xf32>
    %143 = vector.shape_cast %142 : vector<1x1x256xf32> to vector<1x256xf32>
    %144 = vector.broadcast %143 : vector<1x256xf32> to vector<8x256xf32>
    %145 = arith.addf %141, %144 : vector<8x256xf32>
    %cst_57 = arith.constant 0.000000e+00 : f32
    %146 = vector.broadcast %cst_57 : f32 to vector<8x256xf32>
    %147 = arith.maximumf %145, %146 : vector<8x256xf32>
    %148 = arith.truncf %147 : vector<8x256xf32> to vector<8x256xbf16>
    %c0_58 = arith.constant 0 : index
    %c0_59 = arith.constant 0 : index
    %c0_60 = arith.constant 0 : index
    %149 = vector.load %arg11[%c0_58, %c0_59, %c0_60] : memref<1x256x128xbf16, #tpu.memory_space<vmem>>, vector<1x256x128xbf16>
    %150 = vector.shape_cast %149 : vector<1x256x128xbf16> to vector<256x128xbf16>
    %cst_61 = arith.constant dense<0.000000e+00> : vector<8x128xf32>
    %151 = tpu.matmul %148, %150, %cst_61 {dimension_numbers = #tpu.dot_dimension_numbers<[1], [0], [0], [1], [0, 0, 1, 1], [], []>} : vector<8x256xbf16>, vector<256x128xbf16>, vector<8x128xf32> -> vector<8x128xf32>
    %c0_62 = arith.constant 0 : index
    %c0_63 = arith.constant 0 : index
    %c0_64 = arith.constant 0 : index
    %152 = vector.load %arg12[%c0_62, %c0_63, %c0_64] : memref<1x1x128xf32, #tpu.memory_space<vmem>>, vector<1x1x128xf32>
    %153 = vector.shape_cast %152 : vector<1x1x128xf32> to vector<1x128xf32>
    %154 = vector.broadcast %153 : vector<1x128xf32> to vector<8x128xf32>
    %155 = arith.addf %151, %154 : vector<8x128xf32>
    %156 = arith.addf %155, %137 : vector<8x128xf32>
    %c0_65 = arith.constant 0 : index
    %c0_66 = arith.constant 0 : index
    %c0_67 = arith.constant 0 : index
    %157 = vector.load %arg13[%c0_65, %c0_66, %c0_67] : memref<1x1x128xf32, #tpu.memory_space<vmem>>, vector<1x1x128xf32>
    %158 = vector.shape_cast %157 : vector<1x1x128xf32> to vector<1x128xf32>
    %c0_68 = arith.constant 0 : index
    %c0_69 = arith.constant 0 : index
    %c0_70 = arith.constant 0 : index
    %159 = vector.load %arg14[%c0_68, %c0_69, %c0_70] : memref<1x1x128xf32, #tpu.memory_space<vmem>>, vector<1x1x128xf32>
    %160 = vector.shape_cast %159 : vector<1x1x128xf32> to vector<1x128xf32>
    %cst_71 = arith.constant dense<0.000000e+00> : vector<8xf32>
    %161 = vector.multi_reduction <add>, %156, %cst_71 [1] : vector<8x128xf32> to vector<8xf32>
    %162 = vector.shape_cast %161 : vector<8xf32> to vector<8x1xf32>
    %cst_72 = arith.constant 1.280000e+02 : f32
    %163 = vector.broadcast %cst_72 : f32 to vector<8x1xf32>
    %164 = arith.divf %162, %163 : vector<8x1xf32>
    %165 = vector.broadcast %164 : vector<8x1xf32> to vector<8x128xf32>
    %166 = arith.subf %156, %165 : vector<8x128xf32>
    %167 = arith.mulf %166, %166 : vector<8x128xf32>
    %cst_73 = arith.constant dense<0.000000e+00> : vector<8xf32>
    %168 = vector.multi_reduction <add>, %167, %cst_73 [1] : vector<8x128xf32> to vector<8xf32>
    %169 = vector.shape_cast %168 : vector<8xf32> to vector<8x1xf32>
    %cst_74 = arith.constant 1.280000e+02 : f32
    %170 = vector.broadcast %cst_74 : f32 to vector<8x1xf32>
    %171 = arith.divf %169, %170 : vector<8x1xf32>
    %172 = vector.broadcast %164 : vector<8x1xf32> to vector<8x128xf32>
    %173 = arith.subf %156, %172 : vector<8x128xf32>
    %cst_75 = arith.constant 9.99999974E-6 : f32
    %174 = vector.broadcast %cst_75 : f32 to vector<8x1xf32>
    %175 = arith.addf %171, %174 : vector<8x1xf32>
    %176 = math.rsqrt %175 : vector<8x1xf32>
    %177 = vector.broadcast %176 : vector<8x1xf32> to vector<8x128xf32>
    %178 = arith.mulf %173, %177 : vector<8x128xf32>
    %179 = vector.broadcast %158 : vector<1x128xf32> to vector<8x128xf32>
    %180 = arith.mulf %178, %179 : vector<8x128xf32>
    %181 = vector.broadcast %160 : vector<1x128xf32> to vector<8x128xf32>
    %182 = arith.addf %180, %181 : vector<8x128xf32>
    %c0_76 = arith.constant 0 : index
    %c0_77 = arith.constant 0 : index
    %183 = vector.load %arg16[%c0_76, %c0_77] : memref<8x128xf32, #tpu.memory_space<vmem>>, vector<8x128xf32>
    tpu.vector_store %arg16[%c0_76, %c0_77], %182 {strides = array<i32>} : memref<8x128xf32, #tpu.memory_space<vmem>>, vector<8x128xf32>,
    %c2_i32 = arith.constant 2 : i32
    %184 = arith.cmpi eq, %arg1, %c2_i32 : i32
    %185 = arith.extui %184 : i1 to i32
    %c0_i32_78 = arith.constant 0 : i32
    %186 = arith.cmpi ne, %185, %c0_i32_78 : i32
    scf.if %186 {
      %c0_79 = arith.constant 0 : index
      %c0_80 = arith.constant 0 : index
      %c0_81 = arith.constant 0 : index
      %187 = vector.load %arg15[%c0_79, %c0_80, %c0_81] : memref<1x8x128xf32, #tpu.memory_space<vmem>>, vector<1x8x128xf32>
      %188 = vector.shape_cast %187 : vector<1x8x128xf32> to vector<8x128xf32>
      %189 = vector.shape_cast %182 : vector<8x128xf32> to vector<1x8x128xf32>
      tpu.vector_store %arg15[%c0_79, %c0_80, %c0_81], %189 {strides = array<i32>} : memref<1x8x128xf32, #tpu.memory_space<vmem>>, vector<1x8x128xf32>,
    } else {
    }
    return
  }
  func.func @transform_0(%arg0: i32, %arg1: i32) -> (i32, i32, i32) {
    %c0_i32 = arith.constant 0 : i32
    %c0_i32_0 = arith.constant 0 : i32
    %c0_i32_1 = arith.constant 0 : i32
    return %arg0, %c0_i32, %c0_i32_0 : i32, i32, i32
  }
  func.func @transform_1(%arg0: i32, %arg1: i32) -> (i32, i32, i32) {
    %c0_i32 = arith.constant 0 : i32
    %c0_i32_0 = arith.constant 0 : i32
    %c0_i32_1 = arith.constant 0 : i32
    return %arg1, %c0_i32, %c0_i32_0 : i32, i32, i32
  }
  func.func @transform_2(%arg0: i32, %arg1: i32) -> (i32, i32, i32) {
    %c0_i32 = arith.constant 0 : i32
    %c0_i32_0 = arith.constant 0 : i32
    %c0_i32_1 = arith.constant 0 : i32
    return %arg1, %c0_i32, %c0_i32_0 : i32, i32, i32
  }
  func.func @transform_3(%arg0: i32, %arg1: i32) -> (i32, i32, i32) {
    %c0_i32 = arith.constant 0 : i32
    %c0_i32_0 = arith.constant 0 : i32
    %c0_i32_1 = arith.constant 0 : i32
    return %arg1, %c0_i32, %c0_i32_0 : i32, i32, i32
  }
  func.func @transform_4(%arg0: i32, %arg1: i32) -> (i32, i32, i32) {
    %c0_i32 = arith.constant 0 : i32
    %c0_i32_0 = arith.constant 0 : i32
    %c0_i32_1 = arith.constant 0 : i32
    return %arg1, %c0_i32, %c0_i32_0 : i32, i32, i32
  }
  func.func @transform_5(%arg0: i32, %arg1: i32) -> (i32, i32, i32) {
    %c0_i32 = arith.constant 0 : i32
    %c0_i32_0 = arith.constant 0 : i32
    %c0_i32_1 = arith.constant 0 : i32
    return %arg1, %c0_i32, %c0_i32_0 : i32, i32, i32
  }
  func.func @transform_6(%arg0: i32, %arg1: i32) -> (i32, i32, i32) {
    %c0_i32 = arith.constant 0 : i32
    %c0_i32_0 = arith.constant 0 : i32
    %c0_i32_1 = arith.constant 0 : i32
    return %arg1, %c0_i32, %c0_i32_0 : i32, i32, i32
  }
  func.func @transform_7(%arg0: i32, %arg1: i32) -> (i32, i32, i32) {
    %c0_i32 = arith.constant 0 : i32
    %c0_i32_0 = arith.constant 0 : i32
    %c0_i32_1 = arith.constant 0 : i32
    return %arg1, %c0_i32, %c0_i32_0 : i32, i32, i32
  }
  func.func @transform_8(%arg0: i32, %arg1: i32) -> (i32, i32, i32) {
    %c0_i32 = arith.constant 0 : i32
    %c0_i32_0 = arith.constant 0 : i32
    %c0_i32_1 = arith.constant 0 : i32
    return %arg1, %c0_i32, %c0_i32_0 : i32, i32, i32
  }
  func.func @transform_9(%arg0: i32, %arg1: i32) -> (i32, i32, i32) {
    %c0_i32 = arith.constant 0 : i32
    %c0_i32_0 = arith.constant 0 : i32
    %c0_i32_1 = arith.constant 0 : i32
    return %arg1, %c0_i32, %c0_i32_0 : i32, i32, i32
  }
  func.func @transform_10(%arg0: i32, %arg1: i32) -> (i32, i32, i32) {
    %c0_i32 = arith.constant 0 : i32
    %c0_i32_0 = arith.constant 0 : i32
    %c0_i32_1 = arith.constant 0 : i32
    return %arg1, %c0_i32, %c0_i32_0 : i32, i32, i32
  }
  func.func @transform_11(%arg0: i32, %arg1: i32) -> (i32, i32, i32) {
    %c0_i32 = arith.constant 0 : i32
    %c0_i32_0 = arith.constant 0 : i32
    %c0_i32_1 = arith.constant 0 : i32
    return %arg1, %c0_i32, %c0_i32_0 : i32, i32, i32
  }
  func.func @transform_12(%arg0: i32, %arg1: i32) -> (i32, i32, i32) {
    %c0_i32 = arith.constant 0 : i32
    %c0_i32_0 = arith.constant 0 : i32
    %c0_i32_1 = arith.constant 0 : i32
    return %arg1, %c0_i32, %c0_i32_0 : i32, i32, i32
  }
  func.func @transform_13(%arg0: i32, %arg1: i32) -> (i32, i32, i32) {
    %c0_i32 = arith.constant 0 : i32
    %c0_i32_0 = arith.constant 0 : i32
    %c0_i32_1 = arith.constant 0 : i32
    return %arg0, %c0_i32, %c0_i32_0 : i32, i32, i32
  }
}

</mosaic_0001>

<llo_original>
// kernel: music_encoder_forward.2
$region0: #{music_encoder_forward.2}
  #allocation0 [shape = 'u32[]', space=smem, size = 0x4, offset = 0x4, fixed_abs, tag = 'smem constant byte address 0x4 - core index']
  #allocation1 [shape = 'u32[144,128]{1,0:T(1,128)}', space=vmem, size = 0x12000, scoped, tag = 'internal scratch']
  %s0 = inlined_call_operand.hbm [shape: f32[2,8,32], index: 0, kind: input, shape index: {}]
  %s1 = inlined_call_operand.hbm [shape: f32[32,128], index: 1, kind: input, shape index: {}]
  %s2 = inlined_call_operand.vmem [shape: f32[1,128], index: 2, kind: input, shape index: {}]
  %s3 = inlined_call_operand.vmem [shape: f32[8,128], index: 3, kind: input, shape index: {}]
  %s4 = inlined_call_operand.vmem [shape: f32[2,8,128], index: 4, kind: output, shape index: {}]
  %s5 = sld [smem:[#allocation0]]
  $region57: #{music_encoder_forward.2} parent=0
    _
  %s7 = ssub.s32 1, %s5
  %s8 = scalar_select 0, %s7, %s5
  $region1: #{music_encoder_forward.2} parent=0
    #allocation2 [shape = 'u8[8192]{0}', space=vmem, size = 0x2000, scoped, tag = 'input window, operand 0']
    #allocation3 [shape = 's32[2]{0}', space=sflag, size = 0x8, scoped, tag = 'scoped memory for music_encoder_forward.2']
    #allocation4 [shape = 'u8[16384]{0}', space=vmem, size = 0x4000, scoped, tag = 'input window, operand 1, single buffered']
    #allocation5 [shape = 's32[1]{0}', space=sflag, size = 0x4, scoped, tag = 'scoped memory for music_encoder_forward.2']
    %9 = vsyncpa [#allocation3], 0
    %s10 = scalar_lea.sflag [#allocation3], 1
    %11 = vsyncpa %s10, 0
    %12 = vsyncpa [#allocation5], 0
    loop: start=0, step=1, limit=4
    $region2: #{music_encoder_forward.2} parent=1 // loop_pre_header
      _
    $region3: #{music_encoder_forward.2} parent=1 // loop_header
      %s14 = sphi 0, %s18
      %p15 = scmp.ge.s32.totalorder %s14, 4
      %s24 = sphi 0, %s26
      %s27 = sphi 0, %s24
      %s28 = sphi 0, %s27
      %s44 = sphi 0, %s28
      %s48 = sphi 0, %s48
      %s50 = sphi 0, %s48
      %s51 = sphi 0, %s50
      %s65 = sphi 0, %s51
      %s69 = sphi 0, %s69
      %s71 = sphi 0, %s69
      %s72 = sphi 0, %s71
      %s86 = sphi 0, %s72
      %s90 = sphi 0, %s90
      %s92 = sphi 0, %s90
      %s93 = sphi 0, %s92
      %s107 = sphi 0, %s93
      %s113 = sphi 0, %s115
      %s116 = sphi 0, %s113
      %s117 = sphi 0, %s116
      %s133 = sphi 0, %s117
    $region4: #{music_encoder_forward.2} parent=1 // loop_header_branch
      %17 = sbr.rel (%p15) target = $region8
    $region5: #{music_encoder_forward.2} parent=1 // loop_body
      %s19 = ssub.s32 %s14, 1
      %s20 = ssub.s32 %s14, 2
      %s21 = sadd.s32 %s14, 1
      %s22 = ssub.s32 %s14, %s21
      %p23 = scmp.eq.s32.totalorder %s22, 0
      %s25 = sadd.s32 %s24, 1
      %s26 = scalar_select %p23, %s24, %s25
      %p29 = pneg %p23
      %p30 = scmp.eq.s32.totalorder %s14, 1
      %p31 = por %p29, %p30
      %p32 = scmp.ne.s32.totalorder %s24, %s27
      %p33 = scmp.eq.s32.totalorder %s14, 0
      %p34 = por %p32, %p33
      %p35 = scmp.ne.s32.totalorder %s24, %s27
      %p36 = scmp.eq.s32.totalorder %s19, 1
      %p37 = por %p35, %p36
      %p38 = scmp.ne.s32.totalorder %s27, %s28
      %p39 = scmp.eq.s32.totalorder %s19, 0
      %p40 = por %p38, %p39
      %p41 = scmp.ne.s32.totalorder %s27, %s28
      %p42 = scmp.eq.s32.totalorder %s20, 1
      %p43 = por %p41, %p42
      %p45 = scmp.ne.s32.totalorder %s28, %s44
      %p46 = scmp.eq.s32.totalorder %s20, 0
      %p47 = por %p45, %p46
      %s49 = sadd.s32 %s48, 1
      %p52 = scmp.eq.s32.totalorder %s14, 1
      %p53 = scmp.ne.s32.totalorder %s48, %s50
      %p54 = scmp.eq.s32.totalorder %s14, 0
      %p55 = por %p53, %p54
      %p56 = scmp.ne.s32.totalorder %s48, %s50
      %p57 = scmp.eq.s32.totalorder %s19, 1
      %p58 = por %p56, %p57
      %p59 = scmp.ne.s32.totalorder %s50, %s51
      %p60 = scmp.eq.s32.totalorder %s19, 0
      %p61 = por %p59, %p60
      %p62 = scmp.ne.s32.totalorder %s50, %s51
      %p63 = scmp.eq.s32.totalorder %s20, 1
      %p64 = por %p62, %p63
      %p66 = scmp.ne.s32.totalorder %s51, %s65
      %p67 = scmp.eq.s32.totalorder %s20, 0
      %p68 = por %p66, %p67
      %s70 = sadd.s32 %s69, 1
      %p73 = scmp.eq.s32.totalorder %s14, 1
      %p74 = scmp.ne.s32.totalorder %s69, %s71
      %p75 = scmp.eq.s32.totalorder %s14, 0
      %p76 = por %p74, %p75
      %p77 = scmp.ne.s32.totalorder %s69, %s71
      %p78 = scmp.eq.s32.totalorder %s19, 1
      %p79 = por %p77, %p78
      %p80 = scmp.ne.s32.totalorder %s71, %s72
      %p81 = scmp.eq.s32.totalorder %s19, 0
      %p82 = por %p80, %p81
      %p83 = scmp.ne.s32.totalorder %s71, %s72
      %p84 = scmp.eq.s32.totalorder %s20, 1
      %p85 = por %p83, %p84
      %p87 = scmp.ne.s32.totalorder %s72, %s86
      %p88 = scmp.eq.s32.totalorder %s20, 0
      %p89 = por %p87, %p88
      %s91 = sadd.s32 %s90, 1
      %p94 = scmp.eq.s32.totalorder %s14, 1
      %p95 = scmp.ne.s32.totalorder %s90, %s92
      %p96 = scmp.eq.s32.totalorder %s14, 0
      %p97 = por %p95, %p96
      %p98 = scmp.ne.s32.totalorder %s90, %s92
      %p99 = scmp.eq.s32.totalorder %s19, 1
      %p100 = por %p98, %p99
      %p101 = scmp.ne.s32.totalorder %s92, %s93
      %p102 = scmp.eq.s32.totalorder %s19, 0
      %p103 = por %p101, %p102
      %p104 = scmp.ne.s32.totalorder %s92, %s93
      %p105 = scmp.eq.s32.totalorder %s20, 1
      %p106 = por %p104, %p105
      %p108 = scmp.ne.s32.totalorder %s93, %s107
      %p109 = scmp.eq.s32.totalorder %s20, 0
      %p110 = por %p108, %p109
      %s111 = ssub.s32 %s14, %s21
      %p112 = scmp.eq.s32.totalorder %s111, 0
      %s114 = sadd.s32 %s113, 1
      %s115 = scalar_select %p112, %s113, %s114
      %p118 = pneg %p112
      %p119 = scmp.eq.s32.totalorder %s14, 1
      %p120 = por %p118, %p119
      %p121 = scmp.ne.s32.totalorder %s113, %s116
      %p122 = scmp.eq.s32.totalorder %s14, 0
      %p123 = por %p121, %p122
      %p124 = scmp.ne.s32.totalorder %s113, %s116
      %p125 = scmp.eq.s32.totalorder %s19, 1
      %p126 = por %p124, %p125
      %p127 = scmp.ne.s32.totalorder %s116, %s117
      %p128 = scmp.eq.s32.totalorder %s19, 0
      %p129 = por %p127, %p128
      %p130 = scmp.ne.s32.totalorder %s116, %s117
      %p131 = scmp.eq.s32.totalorder %s20, 1
      %p132 = por %p130, %p131
      %p134 = scmp.ne.s32.totalorder %s117, %s133
      %p135 = scmp.eq.s32.totalorder %s20, 0
      %p136 = por %p134, %p135
      %p137 = scmp.le.s32.totalorder 1, %s14
      %p138 = scmp.lt.s32.totalorder %s14, 3
      %p139 = pnand %p137, %p138
      %p140 = pneg %p139
      // Predicated region
      $region9: #{music_encoder_forward.2} parent=5 // pred_check
        _
      $region10: #{music_encoder_forward.2} parent=5 // pred_check_branch
        %142 = sbr.rel (%p139) target = $region12
      $region11: #{music_encoder_forward.2} parent=5 // pred_region
        %s143 = ssub.s32 %s14, 1
        // Predicated region
        $region13: #{music_encoder_forward.2} parent=11 // pred_check
          %p144 = pneg %p61
        $region14: #{music_encoder_forward.2} parent=11 // pred_check_branch
          %146 = sbr.rel (%p144) target = $region16
        $region15: #{music_encoder_forward.2} parent=11 // pred_region
          %s148 = ssub.s32 512, 512
          %149 = vsyncadd [#allocation5], %s148
          %s150 = sshll.u32 [#allocation4], 4
          %s151 = int_to_ptr.vmem [resolvable:$true] %s150
          %156 = dma.hbm_to_vmem [thread:$0]  %s1, 512, %s151, [#allocation5], 128, 128, 8
        $region16: #{music_encoder_forward.2} parent=11 // pred_fallthru
          _
        // Predicated region
        $region17: #{music_encoder_forward.2} parent=11 // pred_check
          %p157 = pneg %p82
        $region18: #{music_encoder_forward.2} parent=11 // pred_check_branch
          %159 = sbr.rel (%p157) target = $region20
        $region19: #{music_encoder_forward.2} parent=11 // pred_region
          _
        $region20: #{music_encoder_forward.2} parent=11 // pred_fallthru
          _
        // Predicated region
        $region21: #{music_encoder_forward.2} parent=11 // pred_check
          %p160 = pneg %p103
        $region22: #{music_encoder_forward.2} parent=11 // pred_check_branch
          %162 = sbr.rel (%p160) target = $region24
        $region23: #{music_encoder_forward.2} parent=11 // pred_region
          _
        $region24: #{music_encoder_forward.2} parent=11 // pred_fallthru
          _
      $region12: #{music_encoder_forward.2} parent=5 // pred_fallthru
        _
      %p163 = scmp.lt.s32.totalorder %s14, 2
      // Predicated region
      $region25: #{music_encoder_forward.2} parent=5 // pred_check
        %p164 = pneg %p163
      $region26: #{music_encoder_forward.2} parent=5 // pred_check_branch
        %166 = sbr.rel (%p164) target = $region28
      $region27: #{music_encoder_forward.2} parent=5 // pred_region
        // Predicated region
        $region29: #{music_encoder_forward.2} parent=27 // pred_check
          %p167 = pneg %p34
        $region30: #{music_encoder_forward.2} parent=27 // pred_check_branch
          %169 = sbr.rel (%p167) target = $region32
        $region31: #{music_encoder_forward.2} parent=27 // pred_region
          %s170 = sand.u32 %s24, 1
          %s171 = scalar_lea.sflag [#allocation3], %s170
          %s172 = sand.u32 %s24, 1
          %s173 = smul.addr %s172, 8
          %s174 = scalar_lea.vmem [#allocation2], %s173
          %s176 = ssub.s32 128, 128
          %177 = vsyncadd %s171, %s176
          %s178 = smul.addr %s14, 128
          %s179 = scalar_lea.hbm %s0, %s178
          %s181 = sshll.u32 %s174, 4
          %s182 = int_to_ptr.vmem [resolvable:$true] %s181
          %184 = dma.hbm_to_vmem [thread:$0]  %s179, 128, %s182, %s171
        $region32: #{music_encoder_forward.2} parent=27 // pred_fallthru
          _
      $region28: #{music_encoder_forward.2} parent=5 // pred_fallthru
        _
      %p185 = scmp.le.s32.totalorder 1, %s14
      %p186 = scmp.lt.s32.totalorder %s14, 3
      %p187 = pnand %p185, %p186
      %p188 = pneg %p187
      // Predicated region
      $region33: #{music_encoder_forward.2} parent=5 // pred_check
        _
      $region34: #{music_encoder_forward.2} parent=5 // pred_check_branch
        %190 = sbr.rel (%p187) target = $region36
      $region35: #{music_encoder_forward.2} parent=5 // pred_region
        %s191 = ssub.s32 %s14, 1
        %s192 = sand.u32 %s27, 1
        %s193 = scalar_lea.sflag [#allocation3], %s192
        %s194 = sand.u32 %s27, 1
        %s195 = smul.addr %s194, 8
        %s196 = scalar_lea.vmem [#allocation2], %s195
        // Predicated region
        $region37: #{music_encoder_forward.2} parent=35 // pred_check
          %p197 = pneg %p40
        $region38: #{music_encoder_forward.2} parent=35 // pred_check_branch
          %199 = sbr.rel (%p197) target = $region40
        $region39: #{music_encoder_forward.2} parent=35 // pred_region
          %200 = dma.done %s193, 128
        $region40: #{music_encoder_forward.2} parent=35 // pred_fallthru
          _
        // Predicated region
        $region41: #{music_encoder_forward.2} parent=35 // pred_check
          %p201 = pneg %p61
        $region42: #{music_encoder_forward.2} parent=35 // pred_check_branch
          %203 = sbr.rel (%p201) target = $region44
        $region43: #{music_encoder_forward.2} parent=35 // pred_region
          %204 = dma.done [#allocation5], 512
        $region44: #{music_encoder_forward.2} parent=35 // pred_fallthru
          _
        %s205 = sand.u32 %s27, 1
        %s206 = scalar_lea.sflag [#allocation3], %s205
        %s207 = sand.u32 %s27, 1
        %s208 = smul.addr %s207, 8
        %s209 = scalar_lea.vmem [#allocation2], %s208
        %p210 = pneg %p40
        %p211 = pneg %p37
        %p212 = pneg %p61
        %p213 = pneg %p58
        %p214 = pneg %p82
        %p215 = pneg %p79
        %p216 = pneg %p103
        %p217 = pneg %p100
        %p218 = pneg %p129
        %p219 = pneg %p126
        %p220 = scmp.lt.s32.totalorder %s19, 1
        %s221 = scalar_select %p220, %s19, 1
        %s222 = smul.addr %s221, 8
        %s223 = scalar_lea.vmem %s4, %s222
        %p224 = scmp.lt.s32.totalorder %s19, 1
        %s225 = scalar_select %p224, %s19, 1
        %s226 = smul.addr %s225, 8
        %s227 = scalar_lea.vmem %s4, %s226
        %v228 = vld [vmem:[%s196] sm:$0xff]
        %v229 = vld [vmem:[#allocation4] sm:$0xff]
        %v230 = vld [vmem:[#allocation4 + $0x8] sm:$0xff]
        %v231 = vld [vmem:[#allocation4 + $0x10] sm:$0xff]
        %v232 = vld [vmem:[#allocation4 + $0x18] sm:$0xff]
        %v233 = vld [vmem:[%s2] sm:$0x1]
        %v235 = vlaneseq
        %v236 = vshrl.u32 %v235, 7
        %v237 = vsub.s32 0, %v236
        %v238 = vrot.slane %v233, %v237
        %vm240 = vcmask 261120
        %v242 = vsel %vm240, %v228, 0
        %244 = vmatprep.subr.mxu0 0.0
        %245 = vmatpush1.msra.mxu0 0.0
        %246 = vmatprep.subr.mxu0 0.0
        %247 = vmatpush1.msra.mxu0 0.0
        %248 = vmatprep.subr.mxu0 0.0
        %249 = vmatpush1.msra.mxu0 0.0
        %250 = vmatprep.subr.mxu0 0.0
        %251 = vmatpush1.msra.mxu0 0.0
        %252 = vmatprep.subr.mxu0 0.0
        %253 = vmatpush1.msra.mxu0 0.0
        %254 = vmatprep.subr.mxu0 0.0
        %255 = vmatpush1.msra.mxu0 0.0
        %256 = vmatprep.subr.mxu0 0.0
        %257 = vmatpush1.msra.mxu0 0.0
        %258 = vmatprep.subr.mxu0 0.0
        %259 = vmatpush1.msra.mxu0 0.0
        %260 = vmatprep.subr.mxu0 0.0
        %261 = vmatpush1.msra.mxu0 0.0
        %262 = vmatprep.subr.mxu0 0.0
        %263 = vmatpush1.msra.mxu0 0.0
        %264 = vmatprep.subr.mxu0 0.0
        %265 = vmatpush1.msra.mxu0 0.0
        %266 = vmatprep.subr.mxu0 0.0
        %267 = vmatpush1.msra.mxu0 0.0
        %268 = vmatprep.subr.mxu0 0.0
        %269 = vmatpush1.msra.mxu0 %v232
        %270 = vmatprep.subr.mxu0 0.0
        %271 = vmatpush1.msra.mxu0 %v231
        %272 = vmatprep.subr.mxu0 0.0
        %273 = vmatpush1.msra.mxu0 %v230
        %274 = vmatprep.subr.mxu0 0.0
        %275 = vmatpush1.msra.mxu0 %v229
        %276 = vmatprep.subr.mxu0 0.0
        %277 = vmatpush2.msra.mxu0 0.0
        %278 = vmatprep.subr.mxu0 0.0
        %279 = vmatpush2.msra.mxu0 0.0
        %280 = vmatprep.subr.mxu0 0.0
        %281 = vmatpush2.msra.mxu0 0.0
        %282 = vmatprep.subr.mxu0 0.0
        %283 = vmatpush2.msra.mxu0 0.0
        %284 = vmatprep.subr.mxu0 0.0
        %285 = vmatpush2.msra.mxu0 0.0
        %286 = vmatprep.subr.mxu0 0.0
        %287 = vmatpush2.msra.mxu0 0.0
        %288 = vmatprep.subr.mxu0 0.0
        %289 = vmatpush2.msra.mxu0 0.0
        %290 = vmatprep.subr.mxu0 0.0
        %291 = vmatpush2.msra.mxu0 0.0
        %292 = vmatprep.subr.mxu0 0.0
        %293 = vmatpush2.msra.mxu0 0.0
        %294 = vmatprep.subr.mxu0 0.0
        %295 = vmatpush2.msra.mxu0 0.0
        %296 = vmatprep.subr.mxu0 0.0
        %297 = vmatpush2.msra.mxu0 0.0
        %298 = vmatprep.subr.mxu0 0.0
        %299 = vmatpush2.msra.mxu0 0.0
        %300 = vmatprep.subr.mxu0 0.0
        %301 = vmatpush2.msra.mxu0 0.0
        %302 = vmatprep.subr.mxu0 0.0
        %303 = vmatpush2.msra.mxu0 0.0
        %304 = vmatprep.subr.mxu0 0.0
        %305 = vmatpush2.msra.mxu0 0.0
        %306 = vmatprep.subr.mxu0 0.0
        %307 = vmatpush2.msra.mxu0 0.0
        %308 = vmatprep.mubr.f32.mxu0 0.0
        %309 = vmatmul.mubr.f32.gmra.mxu0 %v242
        %v310 = vpop.f32.mrf.mxu0
        %v311 = vadd.f32 %v238, %v310
        %v312 = vpop.f32.mrf.mxu0
        %313 = vdwg.mxu0
        %v314 = vld [vmem:[%s3] sm:$0xff]
        %v315 = vadd.f32 %v311, %v314
        %316 = vst [vmem:[%s227] sm:$0xff] %v315
        %p317 = scmp.lt.s32.totalorder %s19, 1
        %s318 = scalar_select %p317, %s19, 1
        %s319 = smul.addr %s318, 8
        %s320 = scalar_lea.vmem %s4, %s319
        // Predicated region
        $region45: #{music_encoder_forward.2} parent=35 // pred_check
          %p321 = pneg %p126
        $region46: #{music_encoder_forward.2} parent=35 // pred_check_branch
          %323 = sbr.rel (%p321) target = $region48
        $region47: #{music_encoder_forward.2} parent=35 // pred_region
          _
        $region48: #{music_encoder_forward.2} parent=35 // pred_fallthru
          _
      $region36: #{music_encoder_forward.2} parent=5 // pred_fallthru
        _
      %p324 = scmp.le.s32.totalorder 2, %s14
      // Predicated region
      $region49: #{music_encoder_forward.2} parent=5 // pred_check
        %p325 = pneg %p324
      $region50: #{music_encoder_forward.2} parent=5 // pred_check_branch
        %327 = sbr.rel (%p325) target = $region52
      $region51: #{music_encoder_forward.2} parent=5 // pred_region
        %s328 = ssub.s32 %s14, 2
        // Predicated region
        $region53: #{music_encoder_forward.2} parent=51 // pred_check
          %p329 = pneg %p132
        $region54: #{music_encoder_forward.2} parent=51 // pred_check_branch
          %331 = sbr.rel (%p329) target = $region56
        $region55: #{music_encoder_forward.2} parent=51 // pred_region
          %p332 = scmp.lt.s32.totalorder %s20, 1
          %s333 = scalar_select %p332, %s20, 1
          %s334 = smul.addr %s333, 8
          %s335 = scalar_lea.vmem %s4, %s334
        $region56: #{music_encoder_forward.2} parent=51 // pred_fallthru
          _
      $region52: #{music_encoder_forward.2} parent=5 // pred_fallthru
        _
    $region6: #{music_encoder_forward.2} parent=1 // loop_footer
      %s18 = sadd.s32 1, %s14
    $region7: #{music_encoder_forward.2} parent=1 // loop_footer_branch
      %13 = sbr.rel target = $region3
    $region8: #{music_encoder_forward.2} parent=1 // loop_exit
      _
    %336 = vsyncpa [#allocation3], 1
    %s337 = scalar_lea.sflag [#allocation3], 1
    %338 = vsyncpa %s337, 1
    %339 = vsyncpa [#allocation5], 1

// kernel: music_encoder_forward.3
$region0: #{music_encoder_forward.3}
  #allocation0 [shape = 'u32[]', space=smem, size = 0x4, offset = 0x4, fixed_abs, tag = 'smem constant byte address 0x4 - core index']
  #allocation1 [shape = 'u32[144,128]{1,0:T(1,128)}', space=vmem, size = 0x12000, scoped, tag = 'internal scratch']
  #allocation2 [shape = 'f32[8,128]{1,0:T(8,128)}', space=vmem, size = 0x1000, scoped, tag = 'scratch operand']
  %s0 = inlined_call_operand.vmem [shape: f32[2,8,128], index: 0, kind: input, shape index: {}]
  %s1 = inlined_call_operand.hbm [shape: bf16[3,128,384], index: 1, kind: input, shape index: {}]
  %s2 = inlined_call_operand.vmem [shape: f32[3,1,384], index: 2, kind: input, shape index: {}]
  %s3 = inlined_call_operand.hbm [shape: bf16[3,128,128], index: 3, kind: input, shape index: {}]
  %s4 = inlined_call_operand.vmem [shape: f32[3,1,128], index: 4, kind: input, shape index: {}]
  %s5 = inlined_call_operand.vmem [shape: f32[3,1,128], index: 5, kind: input, shape index: {}]
  %s6 = inlined_call_operand.vmem [shape: f32[3,1,128], index: 6, kind: input, shape index: {}]
  %s7 = inlined_call_operand.hbm [shape: bf16[3,128,256], index: 7, kind: input, shape index: {}]
  %s8 = inlined_call_operand.vmem [shape: f32[3,1,256], index: 8, kind: input, shape index: {}]
  %s9 = inlined_call_operand.hbm [shape: bf16[3,256,128], index: 9, kind: input, shape index: {}]
  %s10 = inlined_call_operand.vmem [shape: f32[3,1,128], index: 10, kind: input, shape index: {}]
  %s11 = inlined_call_operand.vmem [shape: f32[3,1,128], index: 11, kind: input, shape index: {}]
  %s12 = inlined_call_operand.vmem [shape: f32[3,1,128], index: 12, kind: input, shape index: {}]
  %s13 = inlined_call_operand.hbm [shape: f32[2,8,128], index: 13, kind: output, shape index: {}]
  %s14 = sld [smem:[#allocation0]]
  $region109: #{music_encoder_forward.3} parent=0
    _
  %s16 = ssub.s32 1, %s14
  %s17 = scalar_select 0, %s16, %s14
  $region1: #{music_encoder_forward.3} parent=0
    #allocation3 [shape = 'u8[196608]{0}', space=vmem, size = 0x30000, scoped, tag = 'input window, operand 1']
    #allocation4 [shape = 's32[2]{0}', space=sflag, size = 0x8, scoped, tag = 'scoped memory for music_encoder_forward.3']
    #allocation5 [shape = 's32[2]{0}', space=sflag, size = 0x8, scoped, tag = 'scoped memory for music_encoder_forward.3']
    #allocation6 [shape = 'u8[65536]{0}', space=vmem, size = 0x10000, scoped, tag = 'input window, operand 3']
    #allocation7 [shape = 's32[2]{0}', space=sflag, size = 0x8, scoped, tag = 'scoped memory for music_encoder_forward.3']
    #allocation8 [shape = 'u8[131072]{0}', space=vmem, size = 0x20000, scoped, tag = 'input window, operand 7']
    #allocation9 [shape = 'u8[131072]{0}', space=vmem, size = 0x20000, scoped, tag = 'input window, operand 9']
    #allocation10 [shape = 's32[2]{0}', space=sflag, size = 0x8, scoped, tag = 'scoped memory for music_encoder_forward.3']
    #allocation11 [shape = 'u8[8192]{0}', space=vmem, size = 0x2000, scoped, tag = 'output window, operand 0']
    %18 = vsyncpa [#allocation4], 0
    %s19 = scalar_lea.sflag [#allocation4], 1
    %20 = vsyncpa %s19, 0
    %21 = vsyncpa [#allocation7], 0
    %s22 = scalar_lea.sflag [#allocation7], 1
    %23 = vsyncpa %s22, 0
    %24 = vsyncpa [#allocation10], 0
    %s25 = scalar_lea.sflag [#allocation10], 1
    %26 = vsyncpa %s25, 0
    %27 = vsyncpa [#allocation5], 0
    %s28 = scalar_lea.sflag [#allocation5], 1
    %29 = vsyncpa %s28, 0
    loop: start=0, step=1, limit=8
    $region2: #{music_encoder_forward.3} parent=1 // loop_pre_header
      _
    $region3: #{music_encoder_forward.3} parent=1 // loop_header
      %s31 = sphi 0, %s35
      %p32 = scmp.ge.s32.totalorder %s31, 8
      %s38 = sphi 0, %s50
      %s39 = sphi 0, %s46
      %s40 = sphi 0, %s38
      %s41 = sphi 0, %s39
      %s42 = sphi 0, %s40
      %s43 = sphi 0, %s41
      %s53 = sphi 0, %s55
      %s56 = sphi 0, %s53
      %s57 = sphi 0, %s56
      %s73 = sphi 0, %s57
      %s79 = sphi 0, %s81
      %s82 = sphi 0, %s79
      %s83 = sphi 0, %s82
      %s99 = sphi 0, %s83
      %s105 = sphi 0, %s107
      %s108 = sphi 0, %s105
      %s109 = sphi 0, %s108
      %s125 = sphi 0, %s109
      %s131 = sphi 0, %s133
      %s134 = sphi 0, %s131
      %s135 = sphi 0, %s134
      %s151 = sphi 0, %s135
      %s157 = sphi 0, %s159
      %s160 = sphi 0, %s157
      %s161 = sphi 0, %s160
      %s177 = sphi 0, %s161
      %s183 = sphi 0, %s185
      %s186 = sphi 0, %s183
      %s187 = sphi 0, %s186
      %s203 = sphi 0, %s187
      %s209 = sphi 0, %s211
      %s212 = sphi 0, %s209
      %s213 = sphi 0, %s212
      %s229 = sphi 0, %s213
      %s235 = sphi 0, %s237
      %s238 = sphi 0, %s235
      %s239 = sphi 0, %s238
      %s255 = sphi 0, %s239
      %s261 = sphi 0, %s263
      %s264 = sphi 0, %s261
      %s265 = sphi 0, %s264
      %s281 = sphi 0, %s265
      %s287 = sphi 0, %s289
      %s290 = sphi 0, %s287
      %s291 = sphi 0, %s290
      %s307 = sphi 0, %s291
      %s313 = sphi 0, %s315
      %s316 = sphi 0, %s313
      %s317 = sphi 0, %s316
      %s333 = sphi 0, %s317
      %s339 = sphi 0, %s341
      %s342 = sphi 0, %s339
      %s343 = sphi 0, %s342
      %s359 = sphi 0, %s343
      %s365 = sphi 0, %s367
      %s368 = sphi 0, %s365
      %s369 = sphi 0, %s368
      %s385 = sphi 0, %s369
      %s391 = sphi 0, %s393
      %s394 = sphi 0, %s391
      %s395 = sphi 0, %s394
      %s411 = sphi 0, %s395
    $region4: #{music_encoder_forward.3} parent=1 // loop_header_branch
      %34 = sbr.rel (%p32) target = $region8
    $region5: #{music_encoder_forward.3} parent=1 // loop_body
      %s36 = ssub.s32 %s31, 1
      %s37 = ssub.s32 %s31, 2
      %s44 = sadd.s32 1, %s39
      %p45 = scmp.ge.s32.totalorder %s44, 3
      %s46 = scalar_select %p45, 0, %s44
      %s47 = sadd.s32 1, %s38
      %s48 = scalar_select %p45, %s47, %s38
      %p49 = scmp.ge.s32.totalorder %s48, 2
      %s50 = scalar_select %p49, 0, %s48
      %s51 = ssub.s32 %s38, %s50
      %p52 = scmp.eq.s32.totalorder %s51, 0
      %s54 = sadd.s32 %s53, 1
      %s55 = scalar_select %p52, %s53, %s54
      %p58 = pneg %p52
      %p59 = scmp.eq.s32.totalorder %s31, 5
      %p60 = por %p58, %p59
      %p61 = scmp.ne.s32.totalorder %s53, %s56
      %p62 = scmp.eq.s32.totalorder %s31, 0
      %p63 = por %p61, %p62
      %p64 = scmp.ne.s32.totalorder %s53, %s56
      %p65 = scmp.eq.s32.totalorder %s36, 5
      %p66 = por %p64, %p65
      %p67 = scmp.ne.s32.totalorder %s56, %s57
      %p68 = scmp.eq.s32.totalorder %s36, 0
      %p69 = por %p67, %p68
      %p70 = scmp.ne.s32.totalorder %s56, %s57
      %p71 = scmp.eq.s32.totalorder %s37, 5
      %p72 = por %p70, %p71
      %p74 = scmp.ne.s32.totalorder %s57, %s73
      %p75 = scmp.eq.s32.totalorder %s37, 0
      %p76 = por %p74, %p75
      %s77 = ssub.s32 %s39, %s46
      %p78 = scmp.eq.s32.totalorder %s77, 0
      %s80 = sadd.s32 %s79, 1
      %s81 = scalar_select %p78, %s79, %s80
      %p84 = pneg %p78
      %p85 = scmp.eq.s32.totalorder %s31, 5
      %p86 = por %p84, %p85
      %p87 = scmp.ne.s32.totalorder %s79, %s82
      %p88 = scmp.eq.s32.totalorder %s31, 0
      %p89 = por %p87, %p88
      %p90 = scmp.ne.s32.totalorder %s79, %s82
      %p91 = scmp.eq.s32.totalorder %s36, 5
      %p92 = por %p90, %p91
      %p93 = scmp.ne.s32.totalorder %s82, %s83
      %p94 = scmp.eq.s32.totalorder %s36, 0
      %p95 = por %p93, %p94
      %p96 = scmp.ne.s32.totalorder %s82, %s83
      %p97 = scmp.eq.s32.totalorder %s37, 5
      %p98 = por %p96, %p97
      %p100 = scmp.ne.s32.totalorder %s83, %s99
      %p101 = scmp.eq.s32.totalorder %s37, 0
      %p102 = por %p100, %p101
      %s103 = ssub.s32 %s39, %s46
      %p104 = scmp.eq.s32.totalorder %s103, 0
      %s106 = sadd.s32 %s105, 1
      %s107 = scalar_select %p104, %s105, %s106
      %p110 = pneg %p104
      %p111 = scmp.eq.s32.totalorder %s31, 5
      %p112 = por %p110, %p111
      %p113 = scmp.ne.s32.totalorder %s105, %s108
      %p114 = scmp.eq.s32.totalorder %s31, 0
      %p115 = por %p113, %p114
      %p116 = scmp.ne.s32.totalorder %s105, %s108
      %p117 = scmp.eq.s32.totalorder %s36, 5
      %p118 = por %p116, %p117
      %p119 = scmp.ne.s32.totalorder %s108, %s109
      %p120 = scmp.eq.s32.totalorder %s36, 0
      %p121 = por %p119, %p120
      %p122 = scmp.ne.s32.totalorder %s108, %s109
      %p123 = scmp.eq.s32.totalorder %s37, 5
      %p124 = por %p122, %p123
      %p126 = scmp.ne.s32.totalorder %s109, %s125
      %p127 = scmp.eq.s32.totalorder %s37, 0
      %p128 = por %p126, %p127
      %s129 = ssub.s32 %s39, %s46
      %p130 = scmp.eq.s32.totalorder %s129, 0
      %s132 = sadd.s32 %s131, 1
      %s133 = scalar_select %p130, %s131, %s132
      %p136 = pneg %p130
      %p137 = scmp.eq.s32.totalorder %s31, 5
      %p138 = por %p136, %p137
      %p139 = scmp.ne.s32.totalorder %s131, %s134
      %p140 = scmp.eq.s32.totalorder %s31, 0
      %p141 = por %p139, %p140
      %p142 = scmp.ne.s32.totalorder %s131, %s134
      %p143 = scmp.eq.s32.totalorder %s36, 5
      %p144 = por %p142, %p143
      %p145 = scmp.ne.s32.totalorder %s134, %s135
      %p146 = scmp.eq.s32.totalorder %s36, 0
      %p147 = por %p145, %p146
      %p148 = scmp.ne.s32.totalorder %s134, %s135
      %p149 = scmp.eq.s32.totalorder %s37, 5
      %p150 = por %p148, %p149
      %p152 = scmp.ne.s32.totalorder %s135, %s151
      %p153 = scmp.eq.s32.totalorder %s37, 0
      %p154 = por %p152, %p153
      %s155 = ssub.s32 %s39, %s46
      %p156 = scmp.eq.s32.totalorder %s155, 0
      %s158 = sadd.s32 %s157, 1
      %s159 = scalar_select %p156, %s157, %s158
      %p162 = pneg %p156
      %p163 = scmp.eq.s32.totalorder %s31, 5
      %p164 = por %p162, %p163
      %p165 = scmp.ne.s32.totalorder %s157, %s160
      %p166 = scmp.eq.s32.totalorder %s31, 0
      %p167 = por %p165, %p166
      %p168 = scmp.ne.s32.totalorder %s157, %s160
      %p169 = scmp.eq.s32.totalorder %s36, 5
      %p170 = por %p168, %p169
      %p171 = scmp.ne.s32.totalorder %s160, %s161
      %p172 = scmp.eq.s32.totalorder %s36, 0
      %p173 = por %p171, %p172
      %p174 = scmp.ne.s32.totalorder %s160, %s161
      %p175 = scmp.eq.s32.totalorder %s37, 5
      %p176 = por %p174, %p175
      %p178 = scmp.ne.s32.totalorder %s161, %s177
      %p179 = scmp.eq.s32.totalorder %s37, 0
      %p180 = por %p178, %p179
      %s181 = ssub.s32 %s39, %s46
      %p182 = scmp.eq.s32.totalorder %s181, 0
      %s184 = sadd.s32 %s183, 1
      %s185 = scalar_select %p182, %s183, %s184
      %p188 = pneg %p182
      %p189 = scmp.eq.s32.totalorder %s31, 5
      %p190 = por %p188, %p189
      %p191 = scmp.ne.s32.totalorder %s183, %s186
      %p192 = scmp.eq.s32.totalorder %s31, 0
      %p193 = por %p191, %p192
      %p194 = scmp.ne.s32.totalorder %s183, %s186
      %p195 = scmp.eq.s32.totalorder %s36, 5
      %p196 = por %p194, %p195
      %p197 = scmp.ne.s32.totalorder %s186, %s187
      %p198 = scmp.eq.s32.totalorder %s36, 0
      %p199 = por %p197, %p198
      %p200 = scmp.ne.s32.totalorder %s186, %s187
      %p201 = scmp.eq.s32.totalorder %s37, 5
      %p202 = por %p200, %p201
      %p204 = scmp.ne.s32.totalorder %s187, %s203
      %p205 = scmp.eq.s32.totalorder %s37, 0
      %p206 = por %p204, %p205
      %s207 = ssub.s32 %s39, %s46
      %p208 = scmp.eq.s32.totalorder %s207, 0
      %s210 = sadd.s32 %s209, 1
      %s211 = scalar_select %p208, %s209, %s210
      %p214 = pneg %p208
      %p215 = scmp.eq.s32.totalorder %s31, 5
      %p216 = por %p214, %p215
      %p217 = scmp.ne.s32.totalorder %s209, %s212
      %p218 = scmp.eq.s32.totalorder %s31, 0
      %p219 = por %p217, %p218
      %p220 = scmp.ne.s32.totalorder %s209, %s212
      %p221 = scmp.eq.s32.totalorder %s36, 5
      %p222 = por %p220, %p221
      %p223 = scmp.ne.s32.totalorder %s212, %s213
      %p224 = scmp.eq.s32.totalorder %s36, 0
      %p225 = por %p223, %p224
      %p226 = scmp.ne.s32.totalorder %s212, %s213
      %p227 = scmp.eq.s32.totalorder %s37, 5
      %p228 = por %p226, %p227
      %p230 = scmp.ne.s32.totalorder %s213, %s229
      %p231 = scmp.eq.s32.totalorder %s37, 0
      %p232 = por %p230, %p231
      %s233 = ssub.s32 %s39, %s46
      %p234 = scmp.eq.s32.totalorder %s233, 0
      %s236 = sadd.s32 %s235, 1
      %s237 = scalar_select %p234, %s235, %s236
      %p240 = pneg %p234
      %p241 = scmp.eq.s32.totalorder %s31, 5
      %p242 = por %p240, %p241
      %p243 = scmp.ne.s32.totalorder %s235, %s238
      %p244 = scmp.eq.s32.totalorder %s31, 0
      %p245 = por %p243, %p244
      %p246 = scmp.ne.s32.totalorder %s235, %s238
      %p247 = scmp.eq.s32.totalorder %s36, 5
      %p248 = por %p246, %p247
      %p249 = scmp.ne.s32.totalorder %s238, %s239
      %p250 = scmp.eq.s32.totalorder %s36, 0
      %p251 = por %p249, %p250
      %p252 = scmp.ne.s32.totalorder %s238, %s239
      %p253 = scmp.eq.s32.totalorder %s37, 5
      %p254 = por %p252, %p253
      %p256 = scmp.ne.s32.totalorder %s239, %s255
      %p257 = scmp.eq.s32.totalorder %s37, 0
      %p258 = por %p256, %p257
      %s259 = ssub.s32 %s39, %s46
      %p260 = scmp.eq.s32.totalorder %s259, 0
      %s262 = sadd.s32 %s261, 1
      %s263 = scalar_select %p260, %s261, %s262
      %p266 = pneg %p260
      %p267 = scmp.eq.s32.totalorder %s31, 5
      %p268 = por %p266, %p267
      %p269 = scmp.ne.s32.totalorder %s261, %s264
      %p270 = scmp.eq.s32.totalorder %s31, 0
      %p271 = por %p269, %p270
      %p272 = scmp.ne.s32.totalorder %s261, %s264
      %p273 = scmp.eq.s32.totalorder %s36, 5
      %p274 = por %p272, %p273
      %p275 = scmp.ne.s32.totalorder %s264, %s265
      %p276 = scmp.eq.s32.totalorder %s36, 0
      %p277 = por %p275, %p276
      %p278 = scmp.ne.s32.totalorder %s264, %s265
      %p279 = scmp.eq.s32.totalorder %s37, 5
      %p280 = por %p278, %p279
      %p282 = scmp.ne.s32.totalorder %s265, %s281
      %p283 = scmp.eq.s32.totalorder %s37, 0
      %p284 = por %p282, %p283
      %s285 = ssub.s32 %s39, %s46
      %p286 = scmp.eq.s32.totalorder %s285, 0
      %s288 = sadd.s32 %s287, 1
      %s289 = scalar_select %p286, %s287, %s288
      %p292 = pneg %p286
      %p293 = scmp.eq.s32.totalorder %s31, 5
      %p294 = por %p292, %p293
      %p295 = scmp.ne.s32.totalorder %s287, %s290
      %p296 = scmp.eq.s32.totalorder %s31, 0
      %p297 = por %p295, %p296
      %p298 = scmp.ne.s32.totalorder %s287, %s290
      %p299 = scmp.eq.s32.totalorder %s36, 5
      %p300 = por %p298, %p299
      %p301 = scmp.ne.s32.totalorder %s290, %s291
      %p302 = scmp.eq.s32.totalorder %s36, 0
      %p303 = por %p301, %p302
      %p304 = scmp.ne.s32.totalorder %s290, %s291
      %p305 = scmp.eq.s32.totalorder %s37, 5
      %p306 = por %p304, %p305
      %p308 = scmp.ne.s32.totalorder %s291, %s307
      %p309 = scmp.eq.s32.totalorder %s37, 0
      %p310 = por %p308, %p309
      %s311 = ssub.s32 %s39, %s46
      %p312 = scmp.eq.s32.totalorder %s311, 0
      %s314 = sadd.s32 %s313, 1
      %s315 = scalar_select %p312, %s313, %s314
      %p318 = pneg %p312
      %p319 = scmp.eq.s32.totalorder %s31, 5
      %p320 = por %p318, %p319
      %p321 = scmp.ne.s32.totalorder %s313, %s316
      %p322 = scmp.eq.s32.totalorder %s31, 0
      %p323 = por %p321, %p322
      %p324 = scmp.ne.s32.totalorder %s313, %s316
      %p325 = scmp.eq.s32.totalorder %s36, 5
      %p326 = por %p324, %p325
      %p327 = scmp.ne.s32.totalorder %s316, %s317
      %p328 = scmp.eq.s32.totalorder %s36, 0
      %p329 = por %p327, %p328
      %p330 = scmp.ne.s32.totalorder %s316, %s317
      %p331 = scmp.eq.s32.totalorder %s37, 5
      %p332 = por %p330, %p331
      %p334 = scmp.ne.s32.totalorder %s317, %s333
      %p335 = scmp.eq.s32.totalorder %s37, 0
      %p336 = por %p334, %p335
      %s337 = ssub.s32 %s39, %s46
      %p338 = scmp.eq.s32.totalorder %s337, 0
      %s340 = sadd.s32 %s339, 1
      %s341 = scalar_select %p338, %s339, %s340
      %p344 = pneg %p338
      %p345 = scmp.eq.s32.totalorder %s31, 5
      %p346 = por %p344, %p345
      %p347 = scmp.ne.s32.totalorder %s339, %s342
      %p348 = scmp.eq.s32.totalorder %s31, 0
      %p349 = por %p347, %p348
      %p350 = scmp.ne.s32.totalorder %s339, %s342
      %p351 = scmp.eq.s32.totalorder %s36, 5
      %p352 = por %p350, %p351
      %p353 = scmp.ne.s32.totalorder %s342, %s343
      %p354 = scmp.eq.s32.totalorder %s36, 0
      %p355 = por %p353, %p354
      %p356 = scmp.ne.s32.totalorder %s342, %s343
      %p357 = scmp.eq.s32.totalorder %s37, 5
      %p358 = por %p356, %p357
      %p360 = scmp.ne.s32.totalorder %s343, %s359
      %p361 = scmp.eq.s32.totalorder %s37, 0
      %p362 = por %p360, %p361
      %s363 = ssub.s32 %s39, %s46
      %p364 = scmp.eq.s32.totalorder %s363, 0
      %s366 = sadd.s32 %s365, 1
      %s367 = scalar_select %p364, %s365, %s366
      %p370 = pneg %p364
      %p371 = scmp.eq.s32.totalorder %s31, 5
      %p372 = por %p370, %p371
      %p373 = scmp.ne.s32.totalorder %s365, %s368
      %p374 = scmp.eq.s32.totalorder %s31, 0
      %p375 = por %p373, %p374
      %p376 = scmp.ne.s32.totalorder %s365, %s368
      %p377 = scmp.eq.s32.totalorder %s36, 5
      %p378 = por %p376, %p377
      %p379 = scmp.ne.s32.totalorder %s368, %s369
      %p380 = scmp.eq.s32.totalorder %s36, 0
      %p381 = por %p379, %p380
      %p382 = scmp.ne.s32.totalorder %s368, %s369
      %p383 = scmp.eq.s32.totalorder %s37, 5
      %p384 = por %p382, %p383
      %p386 = scmp.ne.s32.totalorder %s369, %s385
      %p387 = scmp.eq.s32.totalorder %s37, 0
      %p388 = por %p386, %p387
      %s389 = ssub.s32 %s38, %s50
      %p390 = scmp.eq.s32.totalorder %s389, 0
      %s392 = sadd.s32 %s391, 1
      %s393 = scalar_select %p390, %s391, %s392
      %p396 = pneg %p390
      %p397 = scmp.eq.s32.totalorder %s31, 5
      %p398 = por %p396, %p397
      %p399 = scmp.ne.s32.totalorder %s391, %s394
      %p400 = scmp.eq.s32.totalorder %s31, 0
      %p401 = por %p399, %p400
      %p402 = scmp.ne.s32.totalorder %s391, %s394
      %p403 = scmp.eq.s32.totalorder %s36, 5
      %p404 = por %p402, %p403
      %p405 = scmp.ne.s32.totalorder %s394, %s395
      %p406 = scmp.eq.s32.totalorder %s36, 0
      %p407 = por %p405, %p406
      %p408 = scmp.ne.s32.totalorder %s394, %s395
      %p409 = scmp.eq.s32.totalorder %s37, 5
      %p410 = por %p408, %p409
      %p412 = scmp.ne.s32.totalorder %s395, %s411
      %p413 = scmp.eq.s32.totalorder %s37, 0
      %p414 = por %p412, %p413
      %p415 = scmp.le.s32.totalorder 1, %s31
      %p416 = scmp.lt.s32.totalorder %s31, 7
      %p417 = pnand %p415, %p416
      %p418 = pneg %p417
      // Predicated region
      $region9: #{music_encoder_forward.3} parent=5 // pred_check
        _
      $region10: #{music_encoder_forward.3} parent=5 // pred_check_branch
        %420 = sbr.rel (%p417) target = $region12
      $region11: #{music_encoder_forward.3} parent=5 // pred_region
        %s421 = ssub.s32 %s31, 1
      $region12: #{music_encoder_forward.3} parent=5 // pred_fallthru
        _
      %p422 = scmp.lt.s32.totalorder %s31, 6
      // Predicated region
      $region13: #{music_encoder_forward.3} parent=5 // pred_check
        %p423 = pneg %p422
      $region14: #{music_encoder_forward.3} parent=5 // pred_check_branch
        %425 = sbr.rel (%p423) target = $region16
      $region15: #{music_encoder_forward.3} parent=5 // pred_region
        // Predicated region
        $region17: #{music_encoder_forward.3} parent=15 // pred_check
          %p426 = pneg %p63
        $region18: #{music_encoder_forward.3} parent=15 // pred_check_branch
          %428 = sbr.rel (%p426) target = $region20
        $region19: #{music_encoder_forward.3} parent=15 // pred_region
          %p429 = scmp.lt.s32.totalorder %s38, 1
          %s430 = scalar_select %p429, %s38, 1
          %s431 = smul.addr %s430, 8
          %s432 = scalar_lea.vmem %s0, %s431
        $region20: #{music_encoder_forward.3} parent=15 // pred_fallthru
          _
        // Predicated region
        $region21: #{music_encoder_forward.3} parent=15 // pred_check
          %p433 = pneg %p89
        $region22: #{music_encoder_forward.3} parent=15 // pred_check_branch
          %435 = sbr.rel (%p433) target = $region24
        $region23: #{music_encoder_forward.3} parent=15 // pred_region
          %s436 = sand.u32 %s79, 1
          %s437 = scalar_lea.sflag [#allocation4], %s436
          %s438 = sand.u32 %s79, 1
          %s439 = smul.addr %s438, 192
          %s440 = scalar_lea.vmem [#allocation3], %s439
          %s442 = ssub.s32 3072, 3072
          %443 = vsyncadd %s437, %s442
          %s444 = smul.addr %s39, 48
          %s445 = smul.addr %s444, 64
          %s446 = scalar_lea.hbm %s1, %s445
          %s447 = sshll.u32 %s440, 4
          %s448 = int_to_ptr.vmem [resolvable:$true] %s447
          %453 = dma.hbm_to_vmem [thread:$0]  %s446, 3072, %s448, %s437, 192, 192, 12
        $region24: #{music_encoder_forward.3} parent=15 // pred_fallthru
          _
        // Predicated region
        $region25: #{music_encoder_forward.3} parent=15 // pred_check
          %p454 = pneg %p115
        $region26: #{music_encoder_forward.3} parent=15 // pred_check_branch
          %456 = sbr.rel (%p454) target = $region28
        $region27: #{music_encoder_forward.3} parent=15 // pred_region
          %p457 = scmp.lt.s32.totalorder %s39, 2
          %s458 = scalar_select %p457, %s39, 2
          %s459 = smul.addr %s458, 3
          %s460 = scalar_lea.vmem %s2, %s459
        $region28: #{music_encoder_forward.3} parent=15 // pred_fallthru
          _
        // Predicated region
        $region29: #{music_encoder_forward.3} parent=15 // pred_check
          %p461 = pneg %p141
        $region30: #{music_encoder_forward.3} parent=15 // pred_check_branch
          %463 = sbr.rel (%p461) target = $region32
        $region31: #{music_encoder_forward.3} parent=15 // pred_region
          %s464 = sand.u32 %s31, 1
          %s465 = scalar_lea.sflag [#allocation7], %s464
          %s466 = sand.u32 %s131, 1
          %s467 = smul.addr %s466, 64
          %s468 = scalar_lea.vmem [#allocation6], %s467
          %s470 = ssub.s32 1024, 1024
          %471 = vsyncadd %s465, %s470
          %s472 = smul.addr %s39, 16
          %s473 = smul.addr %s472, 64
          %s474 = scalar_lea.hbm %s3, %s473
          %s475 = sshll.u32 %s468, 4
          %s476 = int_to_ptr.vmem [resolvable:$true] %s475
          %481 = dma.hbm_to_vmem [thread:$0]  %s474, 1024, %s476, %s465, 64, 64, 4
        $region32: #{music_encoder_forward.3} parent=15 // pred_fallthru
          _
        // Predicated region
        $region33: #{music_encoder_forward.3} parent=15 // pred_check
          %p482 = pneg %p167
        $region34: #{music_encoder_forward.3} parent=15 // pred_check_branch
          %484 = sbr.rel (%p482) target = $region36
        $region35: #{music_encoder_forward.3} parent=15 // pred_region
          %p485 = scmp.lt.s32.totalorder %s39, 2
          %s486 = scalar_select %p485, %s39, 2
          %s487 = scalar_lea.vmem %s4, %s486
        $region36: #{music_encoder_forward.3} parent=15 // pred_fallthru
          _
        // Predicated region
        $region37: #{music_encoder_forward.3} parent=15 // pred_check
          %p488 = pneg %p193
        $region38: #{music_encoder_forward.3} parent=15 // pred_check_branch
          %490 = sbr.rel (%p488) target = $region40
        $region39: #{music_encoder_forward.3} parent=15 // pred_region
          %p491 = scmp.lt.s32.totalorder %s39, 2
          %s492 = scalar_select %p491, %s39, 2
          %s493 = scalar_lea.vmem %s5, %s492
        $region40: #{music_encoder_forward.3} parent=15 // pred_fallthru
          _
        // Predicated region
        $region41: #{music_encoder_forward.3} parent=15 // pred_check
          %p494 = pneg %p219
        $region42: #{music_encoder_forward.3} parent=15 // pred_check_branch
          %496 = sbr.rel (%p494) target = $region44
        $region43: #{music_encoder_forward.3} parent=15 // pred_region
          %p497 = scmp.lt.s32.totalorder %s39, 2
          %s498 = scalar_select %p497, %s39, 2
          %s499 = scalar_lea.vmem %s6, %s498
        $region44: #{music_encoder_forward.3} parent=15 // pred_fallthru
          _
        // Predicated region
        $region45: #{music_encoder_forward.3} parent=15 // pred_check
          %p500 = pneg %p245
        $region46: #{music_encoder_forward.3} parent=15 // pred_check_branch
          %502 = sbr.rel (%p500) target = $region48
        $region47: #{music_encoder_forward.3} parent=15 // pred_region
          %s503 = sand.u32 %s31, 1
          %s504 = scalar_lea.sflag [#allocation7], %s503
          %s505 = sand.u32 %s235, 1
          %s506 = smul.addr %s505, 128
          %s507 = scalar_lea.vmem [#allocation8], %s506
          %s509 = ssub.s32 2048, 2048
          %510 = vsyncadd %s504, %s509
          %s511 = smul.addr %s39, 32
          %s512 = smul.addr %s511, 64
          %s513 = scalar_lea.hbm %s7, %s512
          %s514 = sshll.u32 %s507, 4
          %s515 = int_to_ptr.vmem [resolvable:$true] %s514
          %520 = dma.hbm_to_vmem [thread:$0]  %s513, 2048, %s515, %s504, 128, 128, 8
        $region48: #{music_encoder_forward.3} parent=15 // pred_fallthru
          _
        // Predicated region
        $region49: #{music_encoder_forward.3} parent=15 // pred_check
          %p521 = pneg %p271
        $region50: #{music_encoder_forward.3} parent=15 // pred_check_branch
          %523 = sbr.rel (%p521) target = $region52
        $region51: #{music_encoder_forward.3} parent=15 // pred_region
          %p524 = scmp.lt.s32.totalorder %s39, 2
          %s525 = scalar_select %p524, %s39, 2
          %s526 = smul.addr %s525, 2
          %s527 = scalar_lea.vmem %s8, %s526
        $region52: #{music_encoder_forward.3} parent=15 // pred_fallthru
          _
        // Predicated region
        $region53: #{music_encoder_forward.3} parent=15 // pred_check
          %p528 = pneg %p297
        $region54: #{music_encoder_forward.3} parent=15 // pred_check_branch
          %530 = sbr.rel (%p528) target = $region56
        $region55: #{music_encoder_forward.3} parent=15 // pred_region
          %s531 = sand.u32 %s287, 1
          %s532 = scalar_lea.sflag [#allocation10], %s531
          %s533 = sand.u32 %s287, 1
          %s534 = smul.addr %s533, 128
          %s535 = scalar_lea.vmem [#allocation9], %s534
          %s537 = ssub.s32 2048, 2048
          %538 = vsyncadd %s532, %s537
          %s539 = smul.addr %s39, 32
          %s540 = smul.addr %s539, 64
          %s541 = scalar_lea.hbm %s9, %s540
          %s542 = sshll.u32 %s535, 4
          %s543 = int_to_ptr.vmem [resolvable:$true] %s542
          %548 = dma.hbm_to_vmem [thread:$0]  %s541, 2048, %s543, %s532, 64, 64, 4
        $region56: #{music_encoder_forward.3} parent=15 // pred_fallthru
          _
        // Predicated region
        $region57: #{music_encoder_forward.3} parent=15 // pred_check
          %p549 = pneg %p323
        $region58: #{music_encoder_forward.3} parent=15 // pred_check_branch
          %551 = sbr.rel (%p549) target = $region60
        $region59: #{music_encoder_forward.3} parent=15 // pred_region
          %p552 = scmp.lt.s32.totalorder %s39, 2
          %s553 = scalar_select %p552, %s39, 2
          %s554 = scalar_lea.vmem %s10, %s553
        $region60: #{music_encoder_forward.3} parent=15 // pred_fallthru
          _
        // Predicated region
        $region61: #{music_encoder_forward.3} parent=15 // pred_check
          %p555 = pneg %p349
        $region62: #{music_encoder_forward.3} parent=15 // pred_check_branch
          %557 = sbr.rel (%p555) target = $region64
        $region63: #{music_encoder_forward.3} parent=15 // pred_region
          %p558 = scmp.lt.s32.totalorder %s39, 2
          %s559 = scalar_select %p558, %s39, 2
          %s560 = scalar_lea.vmem %s11, %s559
        $region64: #{music_encoder_forward.3} parent=15 // pred_fallthru
          _
        // Predicated region
        $region65: #{music_encoder_forward.3} parent=15 // pred_check
          %p561 = pneg %p375
        $region66: #{music_encoder_forward.3} parent=15 // pred_check_branch
          %563 = sbr.rel (%p561) target = $region68
        $region67: #{music_encoder_forward.3} parent=15 // pred_region
          %p564 = scmp.lt.s32.totalorder %s39, 2
          %s565 = scalar_select %p564, %s39, 2
          %s566 = scalar_lea.vmem %s12, %s565
        $region68: #{music_encoder_forward.3} parent=15 // pred_fallthru
          _
      $region16: #{music_encoder_forward.3} parent=5 // pred_fallthru
        _
      %p567 = scmp.le.s32.totalorder 1, %s31
      %p568 = scmp.lt.s32.totalorder %s31, 7
      %p569 = pnand %p567, %p568
      %p570 = pneg %p569
      // Predicated region
      $region69: #{music_encoder_forward.3} parent=5 // pred_check
        _
      $region70: #{music_encoder_forward.3} parent=5 // pred_check_branch
        %572 = sbr.rel (%p569) target = $region72
      $region71: #{music_encoder_forward.3} parent=5 // pred_region
        %s573 = ssub.s32 %s31, 1
        %s574 = sand.u32 %s82, 1
        %s575 = scalar_lea.sflag [#allocation4], %s574
        %s576 = sand.u32 %s82, 1
        %s577 = smul.addr %s576, 192
        %s578 = scalar_lea.vmem [#allocation3], %s577
        // Predicated region
        $region73: #{music_encoder_forward.3} parent=71 // pred_check
          %p579 = pneg %p95
        $region74: #{music_encoder_forward.3} parent=71 // pred_check_branch
          %581 = sbr.rel (%p579) target = $region76
        $region75: #{music_encoder_forward.3} parent=71 // pred_region
          %582 = dma.done %s575, 3072
        $region76: #{music_encoder_forward.3} parent=71 // pred_fallthru
          _
        %s583 = sand.u32 %s36, 1
        %s584 = scalar_lea.sflag [#allocation7], %s583
        %s585 = sand.u32 %s134, 1
        %s586 = smul.addr %s585, 64
        %s587 = scalar_lea.vmem [#allocation6], %s586
        // Predicated region
        $region77: #{music_encoder_forward.3} parent=71 // pred_check
          %p588 = pneg %p147
        $region78: #{music_encoder_forward.3} parent=71 // pred_check_branch
          %590 = sbr.rel (%p588) target = $region80
        $region79: #{music_encoder_forward.3} parent=71 // pred_region
          %591 = dma.done %s584, 1024
        $region80: #{music_encoder_forward.3} parent=71 // pred_fallthru
          _
        %s592 = sand.u32 %s36, 1
        %s593 = scalar_lea.sflag [#allocation7], %s592
        %s594 = sand.u32 %s238, 1
        %s595 = smul.addr %s594, 128
        %s596 = scalar_lea.vmem [#allocation8], %s595
        // Predicated region
        $region81: #{music_encoder_forward.3} parent=71 // pred_check
          %p597 = pneg %p251
        $region82: #{music_encoder_forward.3} parent=71 // pred_check_branch
          %599 = sbr.rel (%p597) target = $region84
        $region83: #{music_encoder_forward.3} parent=71 // pred_region
          %600 = dma.done %s593, 2048
        $region84: #{music_encoder_forward.3} parent=71 // pred_fallthru
          _
        %s601 = sand.u32 %s290, 1
        %s602 = scalar_lea.sflag [#allocation10], %s601
        %s603 = sand.u32 %s290, 1
        %s604 = smul.addr %s603, 128
        %s605 = scalar_lea.vmem [#allocation9], %s604
        // Predicated region
        $region85: #{music_encoder_forward.3} parent=71 // pred_check
          %p606 = pneg %p303
        $region86: #{music_encoder_forward.3} parent=71 // pred_check_branch
          %608 = sbr.rel (%p606) target = $region88
        $region87: #{music_encoder_forward.3} parent=71 // pred_region
          %609 = dma.done %s602, 2048
        $region88: #{music_encoder_forward.3} parent=71 // pred_fallthru
          _
        %p610 = scmp.lt.s32.totalorder %s40, 1
        %s611 = scalar_select %p610, %s40, 1
        %s612 = smul.addr %s611, 8
        %s613 = scalar_lea.vmem %s0, %s612
        %p614 = pneg %p69
        %p615 = pneg %p66
        %s616 = sand.u32 %s82, 1
        %s617 = scalar_lea.sflag [#allocation4], %s616
        %s618 = sand.u32 %s82, 1
        %s619 = smul.addr %s618, 192
        %s620 = scalar_lea.vmem [#allocation3], %s619
        %p621 = pneg %p95
        %p622 = pneg %p92
        %p623 = scmp.lt.s32.totalorder %s41, 2
        %s624 = scalar_select %p623, %s41, 2
        %s625 = smul.addr %s624, 3
        %s626 = scalar_lea.vmem %s2, %s625
        %p627 = pneg %p121
        %p628 = pneg %p118
        %s629 = sand.u32 %s36, 1
        %s630 = scalar_lea.sflag [#allocation7], %s629
        %s631 = sand.u32 %s134, 1
        %s632 = smul.addr %s631, 64
        %s633 = scalar_lea.vmem [#allocation6], %s632
        %p634 = pneg %p147
        %p635 = pneg %p144
        %p636 = scmp.lt.s32.totalorder %s41, 2
        %s637 = scalar_select %p636, %s41, 2
        %s638 = scalar_lea.vmem %s4, %s637
        %p639 = pneg %p173
        %p640 = pneg %p170
        %p641 = scmp.lt.s32.totalorder %s41, 2
        %s642 = scalar_select %p641, %s41, 2
        %s643 = scalar_lea.vmem %s5, %s642
        %p644 = pneg %p199
        %p645 = pneg %p196
        %p646 = scmp.lt.s32.totalorder %s41, 2
        %s647 = scalar_select %p646, %s41, 2
        %s648 = scalar_lea.vmem %s6, %s647
        %p649 = pneg %p225
        %p650 = pneg %p222
        %s651 = sand.u32 %s36, 1
        %s652 = scalar_lea.sflag [#allocation7], %s651
        %s653 = sand.u32 %s238, 1
        %s654 = smul.addr %s653, 128
        %s655 = scalar_lea.vmem [#allocation8], %s654
        %p656 = pneg %p251
        %p657 = pneg %p248
        %p658 = scmp.lt.s32.totalorder %s41, 2
        %s659 = scalar_select %p658, %s41, 2
        %s660 = smul.addr %s659, 2
        %s661 = scalar_lea.vmem %s8, %s660
        %p662 = pneg %p277
        %p663 = pneg %p274
        %s664 = sand.u32 %s290, 1
        %s665 = scalar_lea.sflag [#allocation10], %s664
        %s666 = sand.u32 %s290, 1
        %s667 = smul.addr %s666, 128
        %s668 = scalar_lea.vmem [#allocation9], %s667
        %p669 = pneg %p303
        %p670 = pneg %p300
        %p671 = scmp.lt.s32.totalorder %s41, 2
        %s672 = scalar_select %p671, %s41, 2
        %s673 = scalar_lea.vmem %s10, %s672
        %p674 = pneg %p329
        %p675 = pneg %p326
        %p676 = scmp.lt.s32.totalorder %s41, 2
        %s677 = scalar_select %p676, %s41, 2
        %s678 = scalar_lea.vmem %s11, %s677
        %p679 = pneg %p355
        %p680 = pneg %p352
        %p681 = scmp.lt.s32.totalorder %s41, 2
        %s682 = scalar_select %p681, %s41, 2
        %s683 = scalar_lea.vmem %s12, %s682
        %p684 = pneg %p381
        %p685 = pneg %p378
        %p686 = pneg %p407
        %p687 = pneg %p404
        %s688 = sand.u32 %s394, 1
        %s689 = scalar_lea.sflag [#allocation5], %s688
        %s690 = sand.u32 %s394, 1
        %s691 = smul.addr %s690, 8
        %s692 = scalar_lea.vmem [#allocation11], %s691
        %p693 = scmp.lt.s32.totalorder %s40, 1
        %s694 = scalar_select %p693, %s40, 1
        %s695 = smul.addr %s694, 8
        %s696 = scalar_lea.vmem %s0, %s695
        %p697 = scmp.lt.s32.totalorder %s41, 2
        %s698 = scalar_select %p697, %s41, 2
        %s699 = smul.addr %s698, 3
        %s700 = scalar_lea.vmem %s2, %s699
        %p701 = scmp.lt.s32.totalorder %s41, 2
        %s702 = scalar_select %p701, %s41, 2
        %s703 = scalar_lea.vmem %s4, %s702
        %p704 = scmp.lt.s32.totalorder %s41, 2
        %s705 = scalar_select %p704, %s41, 2
        %s706 = scalar_lea.vmem %s5, %s705
        %p707 = scmp.lt.s32.totalorder %s41, 2
        %s708 = scalar_select %p707, %s41, 2
        %s709 = scalar_lea.vmem %s6, %s708
        %p710 = scmp.lt.s32.totalorder %s41, 2
        %s711 = scalar_select %p710, %s41, 2
        %s712 = smul.addr %s711, 2
        %s713 = scalar_lea.vmem %s8, %s712
        %p714 = scmp.lt.s32.totalorder %s41, 2
        %s715 = scalar_select %p714, %s41, 2
        %s716 = scalar_lea.vmem %s10, %s715
        %p717 = scmp.lt.s32.totalorder %s41, 2
        %s718 = scalar_select %p717, %s41, 2
        %s719 = scalar_lea.vmem %s11, %s718
        %p720 = scmp.lt.s32.totalorder %s41, 2
        %s721 = scalar_select %p720, %s41, 2
        %s722 = scalar_lea.vmem %s12, %s721
        %p724 = scmp.eq.s32.totalorder %s41, 0
        // Predicated region
        $region89: #{music_encoder_forward.3} parent=71 // pred_check
          %p725 = pneg %p724
        $region90: #{music_encoder_forward.3} parent=71 // pred_check_branch
          %727 = sbr.rel (%p725) target = $region92
        $region91: #{music_encoder_forward.3} parent=71 // pred_region
          %v728 = vld [vmem:[%s696] sm:$0xff]
          %729 = vst [vmem:[#allocation2] sm:$0xff] %v728
        $region92: #{music_encoder_forward.3} parent=71 // pred_fallthru
          _
        %v730 = vld [vmem:[#allocation2] sm:$0xff]
        %v731 = vpack.c.bf16 %v730, %v730
        %v732 = vld [vmem:[%s578] sm:$0xff]
        %v733 = vld [vmem:[%s578 + $0x8] sm:$0xf]
        %v734 = vld [vmem:[%s578 + $0xc] sm:$0xff]
        %v735 = vld [vmem:[%s578 + $0x14] sm:$0xf]
        %v736 = vld [vmem:[%s578 + $0x18] sm:$0xff]
        %v737 = vld [vmem:[%s578 + $0x20] sm:$0xf]
        %v738 = vld [vmem:[%s578 + $0x24] sm:$0xff]
        %v739 = vld [vmem:[%s578 + $0x2c] sm:$0xf]
        %v740 = vld [vmem:[%s578 + $0x30] sm:$0xff]
        %v741 = vld [vmem:[%s578 + $0x38] sm:$0xf]
        %v742 = vld [vmem:[%s578 + $0x3c] sm:$0xff]
        %v743 = vld [vmem:[%s578 + $0x44] sm:$0xf]
        %v744 = vld [vmem:[%s578 + $0x48] sm:$0xff]
        %v745 = vld [vmem:[%s578 + $0x50] sm:$0xf]
        %v746 = vld [vmem:[%s578 + $0x54] sm:$0xff]
        %v747 = vld [vmem:[%s578 + $0x5c] sm:$0xf]
        %v748 = vld [vmem:[%s578 + $0x60] sm:$0xff]
        %v749 = vld [vmem:[%s578 + $0x68] sm:$0xf]
        %v750 = vld [vmem:[%s578 + $0x6c] sm:$0xff]
        %v751 = vld [vmem:[%s578 + $0x74] sm:$0xf]
        %v752 = vld [vmem:[%s578 + $0x78] sm:$0xff]
        %v753 = vld [vmem:[%s578 + $0x80] sm:$0xf]
        %v754 = vld [vmem:[%s578 + $0x84] sm:$0xff]
        %v755 = vld [vmem:[%s578 + $0x8c] sm:$0xf]
        %v756 = vld [vmem:[%s578 + $0x90] sm:$0xff]
        %v757 = vld [vmem:[%s578 + $0x98] sm:$0xf]
        %v758 = vld [vmem:[%s578 + $0x9c] sm:$0xff]
        %v759 = vld [vmem:[%s578 + $0xa4] sm:$0xf]
        %v760 = vld [vmem:[%s578 + $0xa8] sm:$0xff]
        %v761 = vld [vmem:[%s578 + $0xb0] sm:$0xf]
        %v762 = vld [vmem:[%s578 + $0xb4] sm:$0xff]
        %v763 = vld [vmem:[%s578 + $0xbc] sm:$0xf]
        %v764 = vld [vmem:[%s700] sm:$0x7]
        %v766 = vlaneseq
        %v767 = vshrl.u32 %v766, 7
        %v768 = vsub.s32 0, %v767
        %v769 = vrot.slane %v764, %v768
        %v770 = vlaneseq
        %v771 = vshrl.u32 %v770, 7
        %v772 = vsub.s32 1, %v771
        %v773 = vrot.slane %v764, %v772
        %v774 = vlaneseq
        %v775 = vshrl.u32 %v774, 7
        %v776 = vsub.s32 2, %v775
        %v777 = vrot.slane %v764, %v776
        %v813 = vunpack.c.l.b16 %v732
        %v814 = vunpack.c.h.b16 %v732
        %v815 = vunpack.c.l.b16 %v733
        %v816 = vunpack.c.l.b16 %v734
        %v817 = vunpack.c.h.b16 %v734
        %v818 = vunpack.c.l.b16 %v735
        %v819 = vunpack.c.l.b16 %v736
        %v820 = vunpack.c.h.b16 %v736
        %v821 = vunpack.c.l.b16 %v737
        %v822 = vunpack.c.l.b16 %v738
        %v823 = vunpack.c.h.b16 %v738
        %v824 = vunpack.c.l.b16 %v739
        %v825 = vunpack.c.l.b16 %v740
        %v826 = vunpack.c.h.b16 %v740
        %v827 = vunpack.c.l.b16 %v741
        %v828 = vunpack.c.l.b16 %v742
        %v829 = vunpack.c.h.b16 %v742
        %v830 = vunpack.c.l.b16 %v743
        %v831 = vunpack.c.l.b16 %v744
        %v832 = vunpack.c.h.b16 %v744
        %v833 = vunpack.c.l.b16 %v745
        %v834 = vunpack.c.l.b16 %v746
        %v835 = vunpack.c.h.b16 %v746
        %v836 = vunpack.c.l.b16 %v747
        %v837 = vunpack.c.l.b16 %v748
        %v838 = vunpack.c.h.b16 %v748
        %v839 = vunpack.c.l.b16 %v749
        %v840 = vunpack.c.l.b16 %v750
        %v841 = vunpack.c.h.b16 %v750
        %v842 = vunpack.c.l.b16 %v751
        %v843 = vunpack.c.l.b16 %v752
        %v844 = vunpack.c.h.b16 %v752
        %v845 = vunpack.c.l.b16 %v753
        %v846 = vunpack.c.l.b16 %v754
        %v847 = vunpack.c.h.b16 %v754
        %v848 = vunpack.c.l.b16 %v755
        %v849 = vunpack.c.l.b16 %v756
        %v850 = vunpack.c.h.b16 %v756
        %v851 = vunpack.c.l.b16 %v757
        %v852 = vunpack.c.l.b16 %v758
        %v853 = vunpack.c.h.b16 %v758
        %v854 = vunpack.c.l.b16 %v759
        %v855 = vunpack.c.l.b16 %v760
        %v856 = vunpack.c.h.b16 %v760
        %v857 = vunpack.c.l.b16 %v761
        %v858 = vunpack.c.l.b16 %v762
        %v859 = vunpack.c.h.b16 %v762
        %v860 = vunpack.c.l.b16 %v763
        %v861 = vpack.c.b16 %v816, %v813
        %v862 = vpack.c.b16 %v817, %v814
        %v863 = vpack.c.b16 %v818, %v815
        %v864 = vpack.c.b16 %v822, %v819
        %v865 = vpack.c.b16 %v823, %v820
        %v866 = vpack.c.b16 %v824, %v821
        %v867 = vpack.c.b16 %v828, %v825
        %v868 = vpack.c.b16 %v829, %v826
        %v869 = vpack.c.b16 %v830, %v827
        %v870 = vpack.c.b16 %v834, %v831
        %v871 = vpack.c.b16 %v835, %v832
        %v872 = vpack.c.b16 %v836, %v833
        %v873 = vpack.c.b16 %v840, %v837
        %v874 = vpack.c.b16 %v841, %v838
        %v875 = vpack.c.b16 %v842, %v839
        %v876 = vpack.c.b16 %v846, %v843
        %v877 = vpack.c.b16 %v847, %v844
        %v878 = vpack.c.b16 %v848, %v845
        %v879 = vpack.c.b16 %v852, %v849
        %v880 = vpack.c.b16 %v853, %v850
        %v881 = vpack.c.b16 %v854, %v851
        %v882 = vpack.c.b16 %v858, %v855
        %v883 = vpack.c.b16 %v859, %v856
        %v884 = vpack.c.b16 %v860, %v857
        %909 = vmatprep.subr.bf16.mxu0 %v883
        %910 = vmatpush1.bf16.msra.mxu0 %v882
        %911 = vmatprep.subr.bf16.mxu0 %v880
        %912 = vmatpush1.bf16.msra.mxu0 %v879
        %913 = vmatprep.subr.bf16.mxu0 %v877
        %914 = vmatpush1.bf16.msra.mxu0 %v876
        %915 = vmatprep.subr.bf16.mxu0 %v874
        %916 = vmatpush1.bf16.msra.mxu0 %v873
        %917 = vmatprep.subr.bf16.mxu0 %v871
        %918 = vmatpush1.bf16.msra.mxu0 %v870
        %919 = vmatprep.subr.bf16.mxu0 %v868
        %920 = vmatpush1.bf16.msra.mxu0 %v867
        %921 = vmatprep.subr.bf16.mxu0 %v865
        %922 = vmatpush1.bf16.msra.mxu0 %v864
        %923 = vmatprep.subr.bf16.mxu0 %v862
        %924 = vmatpush1.bf16.msra.mxu0 %v861
        %925 = vmatprep.subr.bf16.mxu0 0
        %926 = vmatpush2.bf16.msra.mxu0 0
        %927 = vmatprep.subr.bf16.mxu0 0
        %928 = vmatpush2.bf16.msra.mxu0 0
        %929 = vmatprep.subr.bf16.mxu0 0
        %930 = vmatpush2.bf16.msra.mxu0 0
        %931 = vmatprep.subr.bf16.mxu0 0
        %932 = vmatpush2.bf16.msra.mxu0 0
        %933 = vmatprep.subr.bf16.mxu0 0
        %934 = vmatpush2.bf16.msra.mxu0 0
        %935 = vmatprep.subr.bf16.mxu0 0
        %936 = vmatpush2.bf16.msra.mxu0 0
        %937 = vmatprep.subr.bf16.mxu0 0
        %938 = vmatpush2.bf16.msra.mxu0 0
        %939 = vmatprep.subr.bf16.mxu0 0
        %940 = vmatpush2.bf16.msra.mxu0 0
        %941 = vmatprep.mubr.bf16.mxu0 0
        %942 = vmatmul.mubr.bf16.gmra.mxu0 %v731
        %v943 = vpop.f32.mrf.mxu0
        %v944 = vadd.f32 %v769, %v943
        %v945 = vpop.f32.mrf.mxu0
        %v946 = vadd.f32 %v773, %v945
        %v947 = vpop.f32.mrf.mxu0
        %v948 = vpop.f32.mrf.mxu0
        %949 = vdwg.mxu0
        %950 = vmatprep.subr.bf16.mxu0 0
        %951 = vmatpush1.bf16.msra.mxu0 %v884
        %952 = vmatprep.subr.bf16.mxu0 0
        %953 = vmatpush1.bf16.msra.mxu0 %v881
        %954 = vmatprep.subr.bf16.mxu0 0
        %955 = vmatpush1.bf16.msra.mxu0 %v878
        %956 = vmatprep.subr.bf16.mxu0 0
        %957 = vmatpush1.bf16.msra.mxu0 %v875
        %958 = vmatprep.subr.bf16.mxu0 0
        %959 = vmatpush1.bf16.msra.mxu0 %v872
        %960 = vmatprep.subr.bf16.mxu0 0
        %961 = vmatpush1.bf16.msra.mxu0 %v869
        %962 = vmatprep.subr.bf16.mxu0 0
        %963 = vmatpush1.bf16.msra.mxu0 %v866
        %964 = vmatprep.subr.bf16.mxu0 0
        %965 = vmatpush1.bf16.msra.mxu0 %v863
        %966 = vmatprep.subr.bf16.mxu0 0
        %967 = vmatpush2.bf16.msra.mxu0 0
        %968 = vmatprep.subr.bf16.mxu0 0
        %969 = vmatpush2.bf16.msra.mxu0 0
        %970 = vmatprep.subr.bf16.mxu0 0
        %971 = vmatpush2.bf16.msra.mxu0 0
        %972 = vmatprep.subr.bf16.mxu0 0
        %973 = vmatpush2.bf16.msra.mxu0 0
        %974 = vmatprep.subr.bf16.mxu0 0
        %975 = vmatpush2.bf16.msra.mxu0 0
        %976 = vmatprep.subr.bf16.mxu0 0
        %977 = vmatpush2.bf16.msra.mxu0 0
        %978 = vmatprep.subr.bf16.mxu0 0
        %979 = vmatpush2.bf16.msra.mxu0 0
        %980 = vmatprep.subr.bf16.mxu0 0
        %981 = vmatpush2.bf16.msra.mxu0 0
        %982 = vmatprep.mubr.bf16.mxu0 0
        %983 = vmatmul.mubr.bf16.gmra.mxu0 %v731
        %v984 = vpop.f32.mrf.mxu0
        %v985 = vadd.f32 %v777, %v984
        %v986 = vpop.f32.mrf.mxu0
        %v987 = vpop.f32.mrf.mxu0
        %v988 = vpop.f32.mrf.mxu0
        %989 = vdwg.mxu0
        %v990 = vpack.c.bf16 %v944, %v944
        %v991 = vpack.c.bf16 %v946, %v946
        %v992 = vpack.c.bf16 %v985, %v985
        %v993 = vld [vmem:[%s587] sm:$0xf]
        %v994 = vld [vmem:[%s587 + $0x4] sm:$0xf]
        %v995 = vld [vmem:[%s587 + $0x8] sm:$0xf]
        %v996 = vld [vmem:[%s587 + $0xc] sm:$0xf]
        %v997 = vld [vmem:[%s587 + $0x10] sm:$0xf]
        %v998 = vld [vmem:[%s587 + $0x14] sm:$0xf]
        %v999 = vld [vmem:[%s587 + $0x18] sm:$0xf]
        %v1000 = vld [vmem:[%s587 + $0x1c] sm:$0xf]
        %v1001 = vld [vmem:[%s587 + $0x20] sm:$0xf]
        %v1002 = vld [vmem:[%s587 + $0x24] sm:$0xf]
        %v1003 = vld [vmem:[%s587 + $0x28] sm:$0xf]
        %v1004 = vld [vmem:[%s587 + $0x2c] sm:$0xf]
        %v1005 = vld [vmem:[%s587 + $0x30] sm:$0xf]
        %v1006 = vld [vmem:[%s587 + $0x34] sm:$0xf]
        %v1007 = vld [vmem:[%s587 + $0x38] sm:$0xf]
        %v1008 = vld [vmem:[%s587 + $0x3c] sm:$0xf]
        %vm1009 = vcmask 261120
        %v1011 = vsel %vm1009, %v990, 0
        %v1014 = vsel %vm1009, %v991, 0
        %1016 = vmatprep.subr.bf16.mxu0 0
        %1017 = vmatpush1.bf16.xpose.msra.mxu0 0
        %1018 = vmatprep.subr.bf16.mxu0 0
        %1019 = vmatpush1.bf16.xpose.msra.mxu0 0
        %1020 = vmatprep.subr.bf16.mxu0 0
        %1021 = vmatpush1.bf16.xpose.msra.mxu0 0
        %1022 = vmatprep.subr.bf16.mxu0 0
        %1023 = vmatpush1.bf16.xpose.msra.mxu0 0
        %1024 = vmatprep.subr.bf16.mxu0 0
        %1025 = vmatpush1.bf16.xpose.msra.mxu0 0
        %1026 = vmatprep.subr.bf16.mxu0 0
        %1027 = vmatpush1.bf16.xpose.msra.mxu0 0
        %1028 = vmatprep.subr.bf16.mxu0 0
        %1029 = vmatpush1.bf16.xpose.msra.mxu0 0
        %1030 = vmatprep.subr.bf16.mxu0 0
        %1031 = vmatpush1.bf16.xpose.msra.mxu0 %v1014
        %1032 = vmatprep.subr.bf16.mxu0 0
        %1033 = vmatpush2.bf16.xpose.msra.mxu0 0
        %1034 = vmatprep.subr.bf16.mxu0 0
        %1035 = vmatpush2.bf16.xpose.msra.mxu0 0
        %1036 = vmatprep.subr.bf16.mxu0 0
        %1037 = vmatpush2.bf16.xpose.msra.mxu0 0
        %1038 = vmatprep.subr.bf16.mxu0 0
        %1039 = vmatpush2.bf16.xpose.msra.mxu0 0
        %1040 = vmatprep.subr.bf16.mxu0 0
        %1041 = vmatpush2.bf16.xpose.msra.mxu0 0
        %1042 = vmatprep.subr.bf16.mxu0 0
        %1043 = vmatpush2.bf16.xpose.msra.mxu0 0
        %1044 = vmatprep.subr.bf16.mxu0 0
        %1045 = vmatpush2.bf16.xpose.msra.mxu0 0
        %1046 = vmatprep.subr.bf16.mxu0 0
        %1047 = vmatpush2.bf16.xpose.msra.mxu0 0
        %1048 = vmatprep.mubr.bf16.mxu0 0
        %1049 = vmatmul.mubr.bf16.gmra.mxu0 %v1011
        %v1050 = vpop.f32.mrf.mxu0
        %v1051 = vadd.f32 0.0, %v1050
        %v1052 = vpop.f32.mrf.mxu0
        %v1053 = vpop.f32.mrf.mxu0
        %v1054 = vpop.f32.mrf.mxu0
        %1055 = vdwg.mxu0
        %v1056 = vmul.f32 %v1051, 0.17677669
        %vm1057 = vcmask 64512
        %v1058 = vsel %vm1057, %v1056, -inf
        %1059 = vmax.xlane.f32.xlu0 %v1058
        %v1060 = vpop.xlane.xlu0 %1059
        %v1061 = vsub.f32 %v1056, %v1060
        %v1062 = vmul.f32 %v1061, 1.442695
        %v1063 = vpow.pop %v1062
        %v1064 = vsel %vm1057, %v1063, 0.0
        %1065 = vadd.xlane.f32.xlu0 %v1064
        %v1066 = vpop.xlane.xlu0 %1065
        %v1067 = vrcp.pop %v1066
        %v1068 = vmul.f32 %v1063, %v1067
        %v1069 = vpack.c.bf16 %v1068, %v1068
        %v1071 = vsel %vm1057, %v1069, 0
        %vm1073 = vcmask 1043456
        %v1075 = vsel %vm1073, %v992, 0
        %1077 = vmatprep.subr.bf16.mxu0 0
        %1078 = vmatpush1.bf16.msra.mxu0 0
        %1079 = vmatprep.subr.bf16.mxu0 0
        %1080 = vmatpush1.bf16.msra.mxu0 0
        %1081 = vmatprep.subr.bf16.mxu0 0
        %1082 = vmatpush1.bf16.msra.mxu0 0
        %1083 = vmatprep.subr.bf16.mxu0 0
        %1084 = vmatpush1.bf16.msra.mxu0 0
        %1085 = vmatprep.subr.bf16.mxu0 0
        %1086 = vmatpush1.bf16.msra.mxu0 0
        %1087 = vmatprep.subr.bf16.mxu0 0
        %1088 = vmatpush1.bf16.msra.mxu0 0
        %1089 = vmatprep.subr.bf16.mxu0 0
        %1090 = vmatpush1.bf16.msra.mxu0 0
        %1091 = vmatprep.subr.bf16.mxu0 0
        %1092 = vmatpush1.bf16.msra.mxu0 %v1075
        %1093 = vmatprep.subr.bf16.mxu0 0
        %1094 = vmatpush2.bf16.msra.mxu0 0
        %1095 = vmatprep.subr.bf16.mxu0 0
        %1096 = vmatpush2.bf16.msra.mxu0 0
        %1097 = vmatprep.subr.bf16.mxu0 0
        %1098 = vmatpush2.bf16.msra.mxu0 0
        %1099 = vmatprep.subr.bf16.mxu0 0
        %1100 = vmatpush2.bf16.msra.mxu0 0
        %1101 = vmatprep.subr.bf16.mxu0 0
        %1102 = vmatpush2.bf16.msra.mxu0 0
        %1103 = vmatprep.subr.bf16.mxu0 0
        %1104 = vmatpush2.bf16.msra.mxu0 0
        %1105 = vmatprep.subr.bf16.mxu0 0
        %1106 = vmatpush2.bf16.msra.mxu0 0
        %1107 = vmatprep.subr.bf16.mxu0 0
        %1108 = vmatpush2.bf16.msra.mxu0 0
        %1109 = vmatprep.mubr.bf16.mxu0 0
        %1110 = vmatmul.mubr.bf16.gmra.mxu0 %v1071
        %v1111 = vpop.f32.mrf.mxu0
        %v1112 = vadd.f32 0.0, %v1111
        %v1113 = vpop.f32.mrf.mxu0
        %v1114 = vpop.f32.mrf.mxu0
        %v1115 = vpop.f32.mrf.mxu0
        %1116 = vdwg.mxu0
        %v1117 = vpack.c.bf16 %v1112, %v1112
        %1119 = vrot.lane.b32.xlu0 %v990, 96
        %v1120 = vpop.permute.xlu0 %1119
        %1122 = vrot.lane.b32.xlu0 %v991, 96
        %v1123 = vpop.permute.xlu0 %1122
        %v1125 = vsel %vm1009, %v1120, 0
        %v1128 = vsel %vm1009, %v1123, 0
        %1130 = vmatprep.subr.bf16.mxu0 0
        %1131 = vmatpush1.bf16.xpose.msra.mxu0 0
        %1132 = vmatprep.subr.bf16.mxu0 0
        %1133 = vmatpush1.bf16.xpose.msra.mxu0 0
        %1134 = vmatprep.subr.bf16.mxu0 0
        %1135 = vmatpush1.bf16.xpose.msra.mxu0 0
        %1136 = vmatprep.subr.bf16.mxu0 0
        %1137 = vmatpush1.bf16.xpose.msra.mxu0 0
        %1138 = vmatprep.subr.bf16.mxu0 0
        %1139 = vmatpush1.bf16.xpose.msra.mxu0 0
        %1140 = vmatprep.subr.bf16.mxu0 0
        %1141 = vmatpush1.bf16.xpose.msra.mxu0 0
        %1142 = vmatprep.subr.bf16.mxu0 0
        %1143 = vmatpush1.bf16.xpose.msra.mxu0 0
        %1144 = vmatprep.subr.bf16.mxu0 0
        %1145 = vmatpush1.bf16.xpose.msra.mxu0 %v1128
        %1146 = vmatprep.subr.bf16.mxu0 0
        %1147 = vmatpush2.bf16.xpose.msra.mxu0 0
        %1148 = vmatprep.subr.bf16.mxu0 0
        %1149 = vmatpush2.bf16.xpose.msra.mxu0 0
        %1150 = vmatprep.subr.bf16.mxu0 0
        %1151 = vmatpush2.bf16.xpose.msra.mxu0 0
        %1152 = vmatprep.subr.bf16.mxu0 0
        %1153 = vmatpush2.bf16.xpose.msra.mxu0 0
        %1154 = vmatprep.subr.bf16.mxu0 0
        %1155 = vmatpush2.bf16.xpose.msra.mxu0 0
        %1156 = vmatprep.subr.bf16.mxu0 0
        %1157 = vmatpush2.bf16.xpose.msra.mxu0 0
        %1158 = vmatprep.subr.bf16.mxu0 0
        %1159 = vmatpush2.bf16.xpose.msra.mxu0 0
        %1160 = vmatprep.subr.bf16.mxu0 0
        %1161 = vmatpush2.bf16.xpose.msra.mxu0 0
        %1162 = vmatprep.mubr.bf16.mxu0 0
        %1163 = vmatmul.mubr.bf16.gmra.mxu0 %v1125
        %v1164 = vpop.f32.mrf.mxu0
        %v1165 = vadd.f32 0.0, %v1164
        %v1166 = vpop.f32.mrf.mxu0
        %v1167 = vpop.f32.mrf.mxu0
        %v1168 = vpop.f32.mrf.mxu0
        %1169 = vdwg.mxu0
        %v1170 = vmul.f32 %v1165, 0.17677669
        %v1171 = vsel %vm1057, %v1170, -inf
        %1172 = vmax.xlane.f32.xlu0 %v1171
        %v1173 = vpop.xlane.xlu0 %1172
        %v1174 = vsub.f32 %v1170, %v1173
        %v1175 = vmul.f32 %v1174, 1.442695
        %v1176 = vpow.pop %v1175
        %v1177 = vsel %vm1057, %v1176, 0.0
        %1178 = vadd.xlane.f32.xlu0 %v1177
        %v1179 = vpop.xlane.xlu0 %1178
        %v1180 = vrcp.pop %v1179
        %v1181 = vmul.f32 %v1176, %v1180
        %v1182 = vpack.c.bf16 %v1181, %v1181
        %1184 = vrot.lane.b32.xlu0 %v992, 96
        %v1185 = vpop.permute.xlu0 %1184
        %v1187 = vsel %vm1057, %v1182, 0
        %v1190 = vsel %vm1073, %v1185, 0
        %1192 = vmatprep.subr.bf16.mxu0 0
        %1193 = vmatpush1.bf16.msra.mxu0 0
        %1194 = vmatprep.subr.bf16.mxu0 0
        %1195 = vmatpush1.bf16.msra.mxu0 0
        %1196 = vmatprep.subr.bf16.mxu0 0
        %1197 = vmatpush1.bf16.msra.mxu0 0
        %1198 = vmatprep.subr.bf16.mxu0 0
        %1199 = vmatpush1.bf16.msra.mxu0 0
        %1200 = vmatprep.subr.bf16.mxu0 0
        %1201 = vmatpush1.bf16.msra.mxu0 0
        %1202 = vmatprep.subr.bf16.mxu0 0
        %1203 = vmatpush1.bf16.msra.mxu0 0
        %1204 = vmatprep.subr.bf16.mxu0 0
        %1205 = vmatpush1.bf16.msra.mxu0 0
        %1206 = vmatprep.subr.bf16.mxu0 0
        %1207 = vmatpush1.bf16.msra.mxu0 %v1190
        %1208 = vmatprep.subr.bf16.mxu0 0
        %1209 = vmatpush2.bf16.msra.mxu0 0
        %1210 = vmatprep.subr.bf16.mxu0 0
        %1211 = vmatpush2.bf16.msra.mxu0 0
        %1212 = vmatprep.subr.bf16.mxu0 0
        %1213 = vmatpush2.bf16.msra.mxu0 0
        %1214 = vmatprep.subr.bf16.mxu0 0
        %1215 = vmatpush2.bf16.msra.mxu0 0
        %1216 = vmatprep.subr.bf16.mxu0 0
        %1217 = vmatpush2.bf16.msra.mxu0 0
        %1218 = vmatprep.subr.bf16.mxu0 0
        %1219 = vmatpush2.bf16.msra.mxu0 0
        %1220 = vmatprep.subr.bf16.mxu0 0
        %1221 = vmatpush2.bf16.msra.mxu0 0
        %1222 = vmatprep.subr.bf16.mxu0 0
        %1223 = vmatpush2.bf16.msra.mxu0 0
        %1224 = vmatprep.mubr.bf16.mxu0 0
        %1225 = vmatmul.mubr.bf16.gmra.mxu0 %v1187
        %v1226 = vpop.f32.mrf.mxu0
        %v1227 = vadd.f32 0.0, %v1226
        %v1228 = vpop.f32.mrf.mxu0
        %v1229 = vpop.f32.mrf.mxu0
        %v1230 = vpop.f32.mrf.mxu0
        %1231 = vdwg.mxu0
        %v1232 = vpack.c.bf16 %v1227, %v1227
        %v1237 = vunpack.c.l.b16 %v997
        %v1238 = vunpack.c.l.b16 %v998
        %v1239 = vunpack.c.l.b16 %v999
        %v1240 = vunpack.c.l.b16 %v1000
        %v1241 = vpack.c.b16 %v1238, %v1237
        %v1242 = vpack.c.b16 %v1240, %v1239
        %v1246 = vsel %vm1009, %v1232, 0
        %1248 = vmatprep.subr.bf16.mxu0 0
        %1249 = vmatpush1.bf16.msra.mxu0 0
        %1250 = vmatprep.subr.bf16.mxu0 0
        %1251 = vmatpush1.bf16.msra.mxu0 0
        %1252 = vmatprep.subr.bf16.mxu0 0
        %1253 = vmatpush1.bf16.msra.mxu0 0
        %1254 = vmatprep.subr.bf16.mxu0 0
        %1255 = vmatpush1.bf16.msra.mxu0 0
        %1256 = vmatprep.subr.bf16.mxu0 0
        %1257 = vmatpush1.bf16.msra.mxu0 0
        %1258 = vmatprep.subr.bf16.mxu0 0
        %1259 = vmatpush1.bf16.msra.mxu0 0
        %1260 = vmatprep.subr.bf16.mxu0 0
        %1261 = vmatpush1.bf16.msra.mxu0 %v1242
        %1262 = vmatprep.subr.bf16.mxu0 0
        %1263 = vmatpush1.bf16.msra.mxu0 %v1241
        %1264 = vmatprep.subr.bf16.mxu0 0
        %1265 = vmatpush2.bf16.msra.mxu0 0
        %1266 = vmatprep.subr.bf16.mxu0 0
        %1267 = vmatpush2.bf16.msra.mxu0 0
        %1268 = vmatprep.subr.bf16.mxu0 0
        %1269 = vmatpush2.bf16.msra.mxu0 0
        %1270 = vmatprep.subr.bf16.mxu0 0
        %1271 = vmatpush2.bf16.msra.mxu0 0
        %1272 = vmatprep.subr.bf16.mxu0 0
        %1273 = vmatpush2.bf16.msra.mxu0 0
        %1274 = vmatprep.subr.bf16.mxu0 0
        %1275 = vmatpush2.bf16.msra.mxu0 0
        %1276 = vmatprep.subr.bf16.mxu0 0
        %1277 = vmatpush2.bf16.msra.mxu0 0
        %1278 = vmatprep.subr.bf16.mxu0 0
        %1279 = vmatpush2.bf16.msra.mxu0 0
        %1280 = vmatprep.mubr.bf16.mxu0 0
        %1281 = vmatmul.mubr.bf16.gmra.mxu0 %v1246
        %v1282 = vpop.f32.mrf.mxu0
        %v1283 = vadd.f32 0.0, %v1282
        %v1284 = vpop.f32.mrf.mxu0
        %v1285 = vpop.f32.mrf.mxu0
        %v1286 = vpop.f32.mrf.mxu0
        %1287 = vdwg.mxu0
        %v1292 = vunpack.c.l.b16 %v993
        %v1293 = vunpack.c.l.b16 %v994
        %v1294 = vunpack.c.l.b16 %v995
        %v1295 = vunpack.c.l.b16 %v996
        %v1296 = vpack.c.b16 %v1293, %v1292
        %v1297 = vpack.c.b16 %v1295, %v1294
        %v1301 = vsel %vm1009, %v1117, 0
        %1303 = vmatprep.subr.bf16.mxu0 0
        %1304 = vmatpush1.bf16.msra.mxu0 0
        %1305 = vmatprep.subr.bf16.mxu0 0
        %1306 = vmatpush1.bf16.msra.mxu0 0
        %1307 = vmatprep.subr.bf16.mxu0 0
        %1308 = vmatpush1.bf16.msra.mxu0 0
        %1309 = vmatprep.subr.bf16.mxu0 0
        %1310 = vmatpush1.bf16.msra.mxu0 0
        %1311 = vmatprep.subr.bf16.mxu0 0
        %1312 = vmatpush1.bf16.msra.mxu0 0
        %1313 = vmatprep.subr.bf16.mxu0 0
        %1314 = vmatpush1.bf16.msra.mxu0 0
        %1315 = vmatprep.subr.bf16.mxu0 0
        %1316 = vmatpush1.bf16.msra.mxu0 %v1297
        %1317 = vmatprep.subr.bf16.mxu0 0
        %1318 = vmatpush1.bf16.msra.mxu0 %v1296
        %1319 = vmatprep.subr.bf16.mxu0 0
        %1320 = vmatpush2.bf16.msra.mxu0 0
        %1321 = vmatprep.subr.bf16.mxu0 0
        %1322 = vmatpush2.bf16.msra.mxu0 0
        %1323 = vmatprep.subr.bf16.mxu0 0
        %1324 = vmatpush2.bf16.msra.mxu0 0
        %1325 = vmatprep.subr.bf16.mxu0 0
        %1326 = vmatpush2.bf16.msra.mxu0 0
        %1327 = vmatprep.subr.bf16.mxu0 0
        %1328 = vmatpush2.bf16.msra.mxu0 0
        %1329 = vmatprep.subr.bf16.mxu0 0
        %1330 = vmatpush2.bf16.msra.mxu0 0
        %1331 = vmatprep.subr.bf16.mxu0 0
        %1332 = vmatpush2.bf16.msra.mxu0 0
        %1333 = vmatprep.subr.bf16.mxu0 0
        %1334 = vmatpush2.bf16.msra.mxu0 0
        %1335 = vmatprep.mubr.bf16.mxu0 0
        %1336 = vmatmul.mubr.bf16.gmra.mxu0 %v1301
        %v1337 = vpop.f32.mrf.mxu0
        %v1338 = vadd.f32 %v1283, %v1337
        %v1339 = vpop.f32.mrf.mxu0
        %v1340 = vpop.f32.mrf.mxu0
        %v1341 = vpop.f32.mrf.mxu0
        %1342 = vdwg.mxu0
        %1343 = vrot.lane.b32.xlu0 %v990, 64
        %v1344 = vpop.permute.xlu0 %1343
        %1345 = vrot.lane.b32.xlu0 %v991, 64
        %v1346 = vpop.permute.xlu0 %1345
        %v1348 = vsel %vm1009, %v1344, 0
        %v1351 = vsel %vm1009, %v1346, 0
        %1353 = vmatprep.subr.bf16.mxu0 0
        %1354 = vmatpush1.bf16.xpose.msra.mxu0 0
        %1355 = vmatprep.subr.bf16.mxu0 0
        %1356 = vmatpush1.bf16.xpose.msra.mxu0 0
        %1357 = vmatprep.subr.bf16.mxu0 0
        %1358 = vmatpush1.bf16.xpose.msra.mxu0 0
        %1359 = vmatprep.subr.bf16.mxu0 0
        %1360 = vmatpush1.bf16.xpose.msra.mxu0 0
        %1361 = vmatprep.subr.bf16.mxu0 0
        %1362 = vmatpush1.bf16.xpose.msra.mxu0 0
        %1363 = vmatprep.subr.bf16.mxu0 0
        %1364 = vmatpush1.bf16.xpose.msra.mxu0 0
        %1365 = vmatprep.subr.bf16.mxu0 0
        %1366 = vmatpush1.bf16.xpose.msra.mxu0 0
        %1367 = vmatprep.subr.bf16.mxu0 0
        %1368 = vmatpush1.bf16.xpose.msra.mxu0 %v1351
        %1369 = vmatprep.subr.bf16.mxu0 0
        %1370 = vmatpush2.bf16.xpose.msra.mxu0 0
        %1371 = vmatprep.subr.bf16.mxu0 0
        %1372 = vmatpush2.bf16.xpose.msra.mxu0 0
        %1373 = vmatprep.subr.bf16.mxu0 0
        %1374 = vmatpush2.bf16.xpose.msra.mxu0 0
        %1375 = vmatprep.subr.bf16.mxu0 0
        %1376 = vmatpush2.bf16.xpose.msra.mxu0 0
        %1377 = vmatprep.subr.bf16.mxu0 0
        %1378 = vmatpush2.bf16.xpose.msra.mxu0 0
        %1379 = vmatprep.subr.bf16.mxu0 0
        %1380 = vmatpush2.bf16.xpose.msra.mxu0 0
        %1381 = vmatprep.subr.bf16.mxu0 0
        %1382 = vmatpush2.bf16.xpose.msra.mxu0 0
        %1383 = vmatprep.subr.bf16.mxu0 0
        %1384 = vmatpush2.bf16.xpose.msra.mxu0 0
        %1385 = vmatprep.mubr.bf16.mxu0 0
        %1386 = vmatmul.mubr.bf16.gmra.mxu0 %v1348
        %v1387 = vpop.f32.mrf.mxu0
        %v1388 = vadd.f32 0.0, %v1387
        %v1389 = vpop.f32.mrf.mxu0
        %v1390 = vpop.f32.mrf.mxu0
        %v1391 = vpop.f32.mrf.mxu0
        %1392 = vdwg.mxu0
        %v1393 = vmul.f32 %v1388, 0.17677669
        %v1394 = vsel %vm1057, %v1393, -inf
        %1395 = vmax.xlane.f32.xlu0 %v1394
        %v1396 = vpop.xlane.xlu0 %1395
        %v1397 = vsub.f32 %v1393, %v1396
        %v1398 = vmul.f32 %v1397, 1.442695
        %v1399 = vpow.pop %v1398
        %v1400 = vsel %vm1057, %v1399, 0.0
        %1401 = vadd.xlane.f32.xlu0 %v1400
        %v1402 = vpop.xlane.xlu0 %1401
        %v1403 = vrcp.pop %v1402
        %v1404 = vmul.f32 %v1399, %v1403
        %v1405 = vpack.c.bf16 %v1404, %v1404
        %1406 = vrot.lane.b32.xlu0 %v992, 64
        %v1407 = vpop.permute.xlu0 %1406
        %v1409 = vsel %vm1057, %v1405, 0
        %v1412 = vsel %vm1073, %v1407, 0
        %1414 = vmatprep.subr.bf16.mxu0 0
        %1415 = vmatpush1.bf16.msra.mxu0 0
        %1416 = vmatprep.subr.bf16.mxu0 0
        %1417 = vmatpush1.bf16.msra.mxu0 0
        %1418 = vmatprep.subr.bf16.mxu0 0
        %1419 = vmatpush1.bf16.msra.mxu0 0
        %1420 = vmatprep.subr.bf16.mxu0 0
        %1421 = vmatpush1.bf16.msra.mxu0 0
        %1422 = vmatprep.subr.bf16.mxu0 0
        %1423 = vmatpush1.bf16.msra.mxu0 0
        %1424 = vmatprep.subr.bf16.mxu0 0
        %1425 = vmatpush1.bf16.msra.mxu0 0
        %1426 = vmatprep.subr.bf16.mxu0 0
        %1427 = vmatpush1.bf16.msra.mxu0 0
        %1428 = vmatprep.subr.bf16.mxu0 0
        %1429 = vmatpush1.bf16.msra.mxu0 %v1412
        %1430 = vmatprep.subr.bf16.mxu0 0
        %1431 = vmatpush2.bf16.msra.mxu0 0
        %1432 = vmatprep.subr.bf16.mxu0 0
        %1433 = vmatpush2.bf16.msra.mxu0 0
        %1434 = vmatprep.subr.bf16.mxu0 0
        %1435 = vmatpush2.bf16.msra.mxu0 0
        %1436 = vmatprep.subr.bf16.mxu0 0
        %1437 = vmatpush2.bf16.msra.mxu0 0
        %1438 = vmatprep.subr.bf16.mxu0 0
        %1439 = vmatpush2.bf16.msra.mxu0 0
        %1440 = vmatprep.subr.bf16.mxu0 0
        %1441 = vmatpush2.bf16.msra.mxu0 0
        %1442 = vmatprep.subr.bf16.mxu0 0
        %1443 = vmatpush2.bf16.msra.mxu0 0
        %1444 = vmatprep.subr.bf16.mxu0 0
        %1445 = vmatpush2.bf16.msra.mxu0 0
        %1446 = vmatprep.mubr.bf16.mxu0 0
        %1447 = vmatmul.mubr.bf16.gmra.mxu0 %v1409
        %v1448 = vpop.f32.mrf.mxu0
        %v1449 = vadd.f32 0.0, %v1448
        %v1450 = vpop.f32.mrf.mxu0
        %v1451 = vpop.f32.mrf.mxu0
        %v1452 = vpop.f32.mrf.mxu0
        %1453 = vdwg.mxu0
        %v1454 = vpack.c.bf16 %v1449, %v1449
        %v1459 = vunpack.c.l.b16 %v1001
        %v1460 = vunpack.c.l.b16 %v1002
        %v1461 = vunpack.c.l.b16 %v1003
        %v1462 = vunpack.c.l.b16 %v1004
        %v1463 = vpack.c.b16 %v1460, %v1459
        %v1464 = vpack.c.b16 %v1462, %v1461
        %v1468 = vsel %vm1009, %v1454, 0
        %1470 = vmatprep.subr.bf16.mxu0 0
        %1471 = vmatpush1.bf16.msra.mxu0 0
        %1472 = vmatprep.subr.bf16.mxu0 0
        %1473 = vmatpush1.bf16.msra.mxu0 0
        %1474 = vmatprep.subr.bf16.mxu0 0
        %1475 = vmatpush1.bf16.msra.mxu0 0
        %1476 = vmatprep.subr.bf16.mxu0 0
        %1477 = vmatpush1.bf16.msra.mxu0 0
        %1478 = vmatprep.subr.bf16.mxu0 0
        %1479 = vmatpush1.bf16.msra.mxu0 0
        %1480 = vmatprep.subr.bf16.mxu0 0
        %1481 = vmatpush1.bf16.msra.mxu0 0
        %1482 = vmatprep.subr.bf16.mxu0 0
        %1483 = vmatpush1.bf16.msra.mxu0 %v1464
        %1484 = vmatprep.subr.bf16.mxu0 0
        %1485 = vmatpush1.bf16.msra.mxu0 %v1463
        %1486 = vmatprep.subr.bf16.mxu0 0
        %1487 = vmatpush2.bf16.msra.mxu0 0
        %1488 = vmatprep.subr.bf16.mxu0 0
        %1489 = vmatpush2.bf16.msra.mxu0 0
        %1490 = vmatprep.subr.bf16.mxu0 0
        %1491 = vmatpush2.bf16.msra.mxu0 0
        %1492 = vmatprep.subr.bf16.mxu0 0
        %1493 = vmatpush2.bf16.msra.mxu0 0
        %1494 = vmatprep.subr.bf16.mxu0 0
        %1495 = vmatpush2.bf16.msra.mxu0 0
        %1496 = vmatprep.subr.bf16.mxu0 0
        %1497 = vmatpush2.bf16.msra.mxu0 0
        %1498 = vmatprep.subr.bf16.mxu0 0
        %1499 = vmatpush2.bf16.msra.mxu0 0
        %1500 = vmatprep.subr.bf16.mxu0 0
        %1501 = vmatpush2.bf16.msra.mxu0 0
        %1502 = vmatprep.mubr.bf16.mxu0 0
        %1503 = vmatmul.mubr.bf16.gmra.mxu0 %v1468
        %v1504 = vpop.f32.mrf.mxu0
        %v1505 = vadd.f32 0.0, %v1504
        %v1506 = vpop.f32.mrf.mxu0
        %v1507 = vpop.f32.mrf.mxu0
        %v1508 = vpop.f32.mrf.mxu0
        %1509 = vdwg.mxu0
        %v1510 = vadd.f32 %v1338, %v1505
        %1511 = vrot.lane.b32.xlu0 %v990, 32
        %v1512 = vpop.permute.xlu0 %1511
        %1513 = vrot.lane.b32.xlu0 %v991, 32
        %v1514 = vpop.permute.xlu0 %1513
        %v1516 = vsel %vm1009, %v1512, 0
        %v1519 = vsel %vm1009, %v1514, 0
        %1521 = vmatprep.subr.bf16.mxu0 0
        %1522 = vmatpush1.bf16.xpose.msra.mxu0 0
        %1523 = vmatprep.subr.bf16.mxu0 0
        %1524 = vmatpush1.bf16.xpose.msra.mxu0 0
        %1525 = vmatprep.subr.bf16.mxu0 0
        %1526 = vmatpush1.bf16.xpose.msra.mxu0 0
        %1527 = vmatprep.subr.bf16.mxu0 0
        %1528 = vmatpush1.bf16.xpose.msra.mxu0 0
        %1529 = vmatprep.subr.bf16.mxu0 0
        %1530 = vmatpush1.bf16.xpose.msra.mxu0 0
        %1531 = vmatprep.subr.bf16.mxu0 0
        %1532 = vmatpush1.bf16.xpose.msra.mxu0 0
        %1533 = vmatprep.subr.bf16.mxu0 0
        %1534 = vmatpush1.bf16.xpose.msra.mxu0 0
        %1535 = vmatprep.subr.bf16.mxu0 0
        %1536 = vmatpush1.bf16.xpose.msra.mxu0 %v1519
        %1537 = vmatprep.subr.bf16.mxu0 0
        %1538 = vmatpush2.bf16.xpose.msra.mxu0 0
        %1539 = vmatprep.subr.bf16.mxu0 0
        %1540 = vmatpush2.bf16.xpose.msra.mxu0 0
        %1541 = vmatprep.subr.bf16.mxu0 0
        %1542 = vmatpush2.bf16.xpose.msra.mxu0 0
        %1543 = vmatprep.subr.bf16.mxu0 0
        %1544 = vmatpush2.bf16.xpose.msra.mxu0 0
        %1545 = vmatprep.subr.bf16.mxu0 0
        %1546 = vmatpush2.bf16.xpose.msra.mxu0 0
        %1547 = vmatprep.subr.bf16.mxu0 0
        %1548 = vmatpush2.bf16.xpose.msra.mxu0 0
        %1549 = vmatprep.subr.bf16.mxu0 0
        %1550 = vmatpush2.bf16.xpose.msra.mxu0 0
        %1551 = vmatprep.subr.bf16.mxu0 0
        %1552 = vmatpush2.bf16.xpose.msra.mxu0 0
        %1553 = vmatprep.mubr.bf16.mxu0 0
        %1554 = vmatmul.mubr.bf16.gmra.mxu0 %v1516
        %v1555 = vpop.f32.mrf.mxu0
        %v1556 = vadd.f32 0.0, %v1555
        %v1557 = vpop.f32.mrf.mxu0
        %v1558 = vpop.f32.mrf.mxu0
        %v1559 = vpop.f32.mrf.mxu0
        %1560 = vdwg.mxu0
        %v1561 = vmul.f32 %v1556, 0.17677669
        %v1562 = vsel %vm1057, %v1561, -inf
        %1563 = vmax.xlane.f32.xlu0 %v1562
        %v1564 = vpop.xlane.xlu0 %1563
        %v1565 = vsub.f32 %v1561, %v1564
        %v1566 = vmul.f32 %v1565, 1.442695
        %v1567 = vpow.pop %v1566
        %v1568 = vsel %vm1057, %v1567, 0.0
        %1569 = vadd.xlane.f32.xlu0 %v1568
        %v1570 = vpop.xlane.xlu0 %1569
        %v1571 = vrcp.pop %v1570
        %v1572 = vmul.f32 %v1567, %v1571
        %v1573 = vpack.c.bf16 %v1572, %v1572
        %1574 = vrot.lane.b32.xlu0 %v992, 32
        %v1575 = vpop.permute.xlu0 %1574
        %v1577 = vsel %vm1057, %v1573, 0
        %v1580 = vsel %vm1073, %v1575, 0
        %1582 = vmatprep.subr.bf16.mxu0 0
        %1583 = vmatpush1.bf16.msra.mxu0 0
        %1584 = vmatprep.subr.bf16.mxu0 0
        %1585 = vmatpush1.bf16.msra.mxu0 0
        %1586 = vmatprep.subr.bf16.mxu0 0
        %1587 = vmatpush1.bf16.msra.mxu0 0
        %1588 = vmatprep.subr.bf16.mxu0 0
        %1589 = vmatpush1.bf16.msra.mxu0 0
        %1590 = vmatprep.subr.bf16.mxu0 0
        %1591 = vmatpush1.bf16.msra.mxu0 0
        %1592 = vmatprep.subr.bf16.mxu0 0
        %1593 = vmatpush1.bf16.msra.mxu0 0
        %1594 = vmatprep.subr.bf16.mxu0 0
        %1595 = vmatpush1.bf16.msra.mxu0 0
        %1596 = vmatprep.subr.bf16.mxu0 0
        %1597 = vmatpush1.bf16.msra.mxu0 %v1580
        %1598 = vmatprep.subr.bf16.mxu0 0
        %1599 = vmatpush2.bf16.msra.mxu0 0
        %1600 = vmatprep.subr.bf16.mxu0 0
        %1601 = vmatpush2.bf16.msra.mxu0 0
        %1602 = vmatprep.subr.bf16.mxu0 0
        %1603 = vmatpush2.bf16.msra.mxu0 0
        %1604 = vmatprep.subr.bf16.mxu0 0
        %1605 = vmatpush2.bf16.msra.mxu0 0
        %1606 = vmatprep.subr.bf16.mxu0 0
        %1607 = vmatpush2.bf16.msra.mxu0 0
        %1608 = vmatprep.subr.bf16.mxu0 0
        %1609 = vmatpush2.bf16.msra.mxu0 0
        %1610 = vmatprep.subr.bf16.mxu0 0
        %1611 = vmatpush2.bf16.msra.mxu0 0
        %1612 = vmatprep.subr.bf16.mxu0 0
        %1613 = vmatpush2.bf16.msra.mxu0 0
        %1614 = vmatprep.mubr.bf16.mxu0 0
        %1615 = vmatmul.mubr.bf16.gmra.mxu0 %v1577
        %v1616 = vpop.f32.mrf.mxu0
        %v1617 = vadd.f32 0.0, %v1616
        %v1618 = vpop.f32.mrf.mxu0
        %v1619 = vpop.f32.mrf.mxu0
        %v1620 = vpop.f32.mrf.mxu0
        %1621 = vdwg.mxu0
        %v1622 = vpack.c.bf16 %v1617, %v1617
        %v1627 = vunpack.c.l.b16 %v1005
        %v1628 = vunpack.c.l.b16 %v1006
        %v1629 = vunpack.c.l.b16 %v1007
        %v1630 = vunpack.c.l.b16 %v1008
        %v1631 = vpack.c.b16 %v1628, %v1627
        %v1632 = vpack.c.b16 %v1630, %v1629
        %v1636 = vsel %vm1009, %v1622, 0
        %1638 = vmatprep.subr.bf16.mxu0 0
        %1639 = vmatpush1.bf16.msra.mxu0 0
        %1640 = vmatprep.subr.bf16.mxu0 0
        %1641 = vmatpush1.bf16.msra.mxu0 0
        %1642 = vmatprep.subr.bf16.mxu0 0
        %1643 = vmatpush1.bf16.msra.mxu0 0
        %1644 = vmatprep.subr.bf16.mxu0 0
        %1645 = vmatpush1.bf16.msra.mxu0 0
        %1646 = vmatprep.subr.bf16.mxu0 0
        %1647 = vmatpush1.bf16.msra.mxu0 0
        %1648 = vmatprep.subr.bf16.mxu0 0
        %1649 = vmatpush1.bf16.msra.mxu0 0
        %1650 = vmatprep.subr.bf16.mxu0 0
        %1651 = vmatpush1.bf16.msra.mxu0 %v1632
        %1652 = vmatprep.subr.bf16.mxu0 0
        %1653 = vmatpush1.bf16.msra.mxu0 %v1631
        %1654 = vmatprep.subr.bf16.mxu0 0
        %1655 = vmatpush2.bf16.msra.mxu0 0
        %1656 = vmatprep.subr.bf16.mxu0 0
        %1657 = vmatpush2.bf16.msra.mxu0 0
        %1658 = vmatprep.subr.bf16.mxu0 0
        %1659 = vmatpush2.bf16.msra.mxu0 0
        %1660 = vmatprep.subr.bf16.mxu0 0
        %1661 = vmatpush2.bf16.msra.mxu0 0
        %1662 = vmatprep.subr.bf16.mxu0 0
        %1663 = vmatpush2.bf16.msra.mxu0 0
        %1664 = vmatprep.subr.bf16.mxu0 0
        %1665 = vmatpush2.bf16.msra.mxu0 0
        %1666 = vmatprep.subr.bf16.mxu0 0
        %1667 = vmatpush2.bf16.msra.mxu0 0
        %1668 = vmatprep.subr.bf16.mxu0 0
        %1669 = vmatpush2.bf16.msra.mxu0 0
        %1670 = vmatprep.mubr.bf16.mxu0 0
        %1671 = vmatmul.mubr.bf16.gmra.mxu0 %v1636
        %v1672 = vpop.f32.mrf.mxu0
        %v1673 = vadd.f32 0.0, %v1672
        %v1674 = vpop.f32.mrf.mxu0
        %v1675 = vpop.f32.mrf.mxu0
        %v1676 = vpop.f32.mrf.mxu0
        %1677 = vdwg.mxu0
        %v1678 = vadd.f32 %v1510, %v1673
        %v1679 = vld [vmem:[%s703] sm:$0x1]
        %v1681 = vlaneseq
        %v1682 = vshrl.u32 %v1681, 7
        %v1683 = vsub.s32 0, %v1682
        %v1684 = vrot.slane %v1679, %v1683
        %v1686 = vadd.f32 %v1678, %v1684
        %v1687 = vadd.f32 %v1686, %v730
        %v1688 = vld [vmem:[%s706] sm:$0x1]
        %v1689 = vld [vmem:[%s709] sm:$0x1]
        %1690 = vadd.xlane.f32.xlu0 %v1687
        %v1691 = vpop.xlane.xlu0 %1690
        %v1692 = vrcp.pop 128.0
        %v1693 = vmul.f32 %v1691, %v1692
        %v1694 = vsub.f32 %v1687, %v1693
        %v1695 = vmul.f32 %v1694, %v1694
        %1696 = vadd.xlane.f32.xlu0 %v1695
        %v1697 = vpop.xlane.xlu0 %1696
        %v1698 = vmul.f32 %v1697, %v1692
        %v1699 = vadd.f32 %v1698, 1e-05
        %v1700 = vrsqrt.pop %v1699
        %v1701 = vmul.f32 %v1694, %v1700
        %v1703 = vlaneseq
        %v1704 = vshrl.u32 %v1703, 7
        %v1705 = vsub.s32 0, %v1704
        %v1706 = vrot.slane %v1688, %v1705
        %v1708 = vmul.f32 %v1701, %v1706
        %v1710 = vlaneseq
        %v1711 = vshrl.u32 %v1710, 7
        %v1712 = vsub.s32 0, %v1711
        %v1713 = vrot.slane %v1689, %v1712
        %v1715 = vadd.f32 %v1708, %v1713
        %v1716 = vpack.c.bf16 %v1715, %v1715
        %v1717 = vld [vmem:[%s596] sm:$0xff]
        %v1718 = vld [vmem:[%s596 + $0x8] sm:$0xff]
        %v1719 = vld [vmem:[%s596 + $0x10] sm:$0xff]
        %v1720 = vld [vmem:[%s596 + $0x18] sm:$0xff]
        %v1721 = vld [vmem:[%s596 + $0x20] sm:$0xff]
        %v1722 = vld [vmem:[%s596 + $0x28] sm:$0xff]
        %v1723 = vld [vmem:[%s596 + $0x30] sm:$0xff]
        %v1724 = vld [vmem:[%s596 + $0x38] sm:$0xff]
        %v1725 = vld [vmem:[%s596 + $0x40] sm:$0xff]
        %v1726 = vld [vmem:[%s596 + $0x48] sm:$0xff]
        %v1727 = vld [vmem:[%s596 + $0x50] sm:$0xff]
        %v1728 = vld [vmem:[%s596 + $0x58] sm:$0xff]
        %v1729 = vld [vmem:[%s596 + $0x60] sm:$0xff]
        %v1730 = vld [vmem:[%s596 + $0x68] sm:$0xff]
        %v1731 = vld [vmem:[%s596 + $0x70] sm:$0xff]
        %v1732 = vld [vmem:[%s596 + $0x78] sm:$0xff]
        %v1733 = vld [vmem:[%s713] sm:$0x3]
        %v1735 = vlaneseq
        %v1736 = vshrl.u32 %v1735, 7
        %v1737 = vsub.s32 0, %v1736
        %v1738 = vrot.slane %v1733, %v1737
        %v1739 = vlaneseq
        %v1740 = vshrl.u32 %v1739, 7
        %v1741 = vsub.s32 1, %v1740
        %v1742 = vrot.slane %v1733, %v1741
        %v1761 = vunpack.c.l.b16 %v1717
        %v1762 = vunpack.c.h.b16 %v1717
        %v1763 = vunpack.c.l.b16 %v1718
        %v1764 = vunpack.c.h.b16 %v1718
        %v1765 = vunpack.c.l.b16 %v1719
        %v1766 = vunpack.c.h.b16 %v1719
        %v1767 = vunpack.c.l.b16 %v1720
        %v1768 = vunpack.c.h.b16 %v1720
        %v1769 = vunpack.c.l.b16 %v1721
        %v1770 = vunpack.c.h.b16 %v1721
        %v1771 = vunpack.c.l.b16 %v1722
        %v1772 = vunpack.c.h.b16 %v1722
        %v1773 = vunpack.c.l.b16 %v1723
        %v1774 = vunpack.c.h.b16 %v1723
        %v1775 = vunpack.c.l.b16 %v1724
        %v1776 = vunpack.c.h.b16 %v1724
        %v1777 = vunpack.c.l.b16 %v1725
        %v1778 = vunpack.c.h.b16 %v1725
        %v1779 = vunpack.c.l.b16 %v1726
        %v1780 = vunpack.c.h.b16 %v1726
        %v1781 = vunpack.c.l.b16 %v1727
        %v1782 = vunpack.c.h.b16 %v1727
        %v1783 = vunpack.c.l.b16 %v1728
        %v1784 = vunpack.c.h.b16 %v1728
        %v1785 = vunpack.c.l.b16 %v1729
        %v1786 = vunpack.c.h.b16 %v1729
        %v1787 = vunpack.c.l.b16 %v1730
        %v1788 = vunpack.c.h.b16 %v1730
        %v1789 = vunpack.c.l.b16 %v1731
        %v1790 = vunpack.c.h.b16 %v1731
        %v1791 = vunpack.c.l.b16 %v1732
        %v1792 = vunpack.c.h.b16 %v1732
        %v1793 = vpack.c.b16 %v1763, %v1761
        %v1794 = vpack.c.b16 %v1764, %v1762
        %v1795 = vpack.c.b16 %v1767, %v1765
        %v1796 = vpack.c.b16 %v1768, %v1766
        %v1797 = vpack.c.b16 %v1771, %v1769
        %v1798 = vpack.c.b16 %v1772, %v1770
        %v1799 = vpack.c.b16 %v1775, %v1773
        %v1800 = vpack.c.b16 %v1776, %v1774
        %v1801 = vpack.c.b16 %v1779, %v1777
        %v1802 = vpack.c.b16 %v1780, %v1778
        %v1803 = vpack.c.b16 %v1783, %v1781
        %v1804 = vpack.c.b16 %v1784, %v1782
        %v1805 = vpack.c.b16 %v1787, %v1785
        %v1806 = vpack.c.b16 %v1788, %v1786
        %v1807 = vpack.c.b16 %v1791, %v1789
        %v1808 = vpack.c.b16 %v1792, %v1790
        %1825 = vmatprep.subr.bf16.mxu0 %v1808
        %1826 = vmatpush1.bf16.msra.mxu0 %v1807
        %1827 = vmatprep.subr.bf16.mxu0 %v1806
        %1828 = vmatpush1.bf16.msra.mxu0 %v1805
        %1829 = vmatprep.subr.bf16.mxu0 %v1804
        %1830 = vmatpush1.bf16.msra.mxu0 %v1803
        %1831 = vmatprep.subr.bf16.mxu0 %v1802
        %1832 = vmatpush1.bf16.msra.mxu0 %v1801
        %1833 = vmatprep.subr.bf16.mxu0 %v1800
        %1834 = vmatpush1.bf16.msra.mxu0 %v1799
        %1835 = vmatprep.subr.bf16.mxu0 %v1798
        %1836 = vmatpush1.bf16.msra.mxu0 %v1797
        %1837 = vmatprep.subr.bf16.mxu0 %v1796
        %1838 = vmatpush1.bf16.msra.mxu0 %v1795
        %1839 = vmatprep.subr.bf16.mxu0 %v1794
        %1840 = vmatpush1.bf16.msra.mxu0 %v1793
        %1841 = vmatprep.subr.bf16.mxu0 0
        %1842 = vmatpush2.bf16.msra.mxu0 0
        %1843 = vmatprep.subr.bf16.mxu0 0
        %1844 = vmatpush2.bf16.msra.mxu0 0
        %1845 = vmatprep.subr.bf16.mxu0 0
        %1846 = vmatpush2.bf16.msra.mxu0 0
        %1847 = vmatprep.subr.bf16.mxu0 0
        %1848 = vmatpush2.bf16.msra.mxu0 0
        %1849 = vmatprep.subr.bf16.mxu0 0
        %1850 = vmatpush2.bf16.msra.mxu0 0
        %1851 = vmatprep.subr.bf16.mxu0 0
        %1852 = vmatpush2.bf16.msra.mxu0 0
        %1853 = vmatprep.subr.bf16.mxu0 0
        %1854 = vmatpush2.bf16.msra.mxu0 0
        %1855 = vmatprep.subr.bf16.mxu0 0
        %1856 = vmatpush2.bf16.msra.mxu0 0
        %1857 = vmatprep.mubr.bf16.mxu0 0
        %1858 = vmatmul.mubr.bf16.gmra.mxu0 %v1716
        %v1859 = vpop.f32.mrf.mxu0
        %v1860 = vadd.f32 %v1738, %v1859
        %v1861 = vpop.f32.mrf.mxu0
        %v1862 = vadd.f32 %v1742, %v1861
        %v1863 = vpop.f32.mrf.mxu0
        %v1864 = vpop.f32.mrf.mxu0
        %1865 = vdwg.mxu0
        %v1866 = vmax.f32 %v1860, 0.0
        %v1867 = vmax.f32 %v1862, 0.0
        %v1868 = vpack.c.bf16 %v1866, %v1866
        %v1869 = vpack.c.bf16 %v1867, %v1867
        %v1870 = vld [vmem:[%s605] sm:$0xf]
        %v1871 = vld [vmem:[%s605 + $0x4] sm:$0xf]
        %v1872 = vld [vmem:[%s605 + $0x8] sm:$0xf]
        %v1873 = vld [vmem:[%s605 + $0xc] sm:$0xf]
        %v1874 = vld [vmem:[%s605 + $0x10] sm:$0xf]
        %v1875 = vld [vmem:[%s605 + $0x14] sm:$0xf]
        %v1876 = vld [vmem:[%s605 + $0x18] sm:$0xf]
        %v1877 = vld [vmem:[%s605 + $0x1c] sm:$0xf]
        %v1878 = vld [vmem:[%s605 + $0x20] sm:$0xf]
        %v1879 = vld [vmem:[%s605 + $0x24] sm:$0xf]
        %v1880 = vld [vmem:[%s605 + $0x28] sm:$0xf]
        %v1881 = vld [vmem:[%s605 + $0x2c] sm:$0xf]
        %v1882 = vld [vmem:[%s605 + $0x30] sm:$0xf]
        %v1883 = vld [vmem:[%s605 + $0x34] sm:$0xf]
        %v1884 = vld [vmem:[%s605 + $0x38] sm:$0xf]
        %v1885 = vld [vmem:[%s605 + $0x3c] sm:$0xf]
        %v1886 = vld [vmem:[%s605 + $0x40] sm:$0xf]
        %v1887 = vld [vmem:[%s605 + $0x44] sm:$0xf]
        %v1888 = vld [vmem:[%s605 + $0x48] sm:$0xf]
        %v1889 = vld [vmem:[%s605 + $0x4c] sm:$0xf]
        %v1890 = vld [vmem:[%s605 + $0x50] sm:$0xf]
        %v1891 = vld [vmem:[%s605 + $0x54] sm:$0xf]
        %v1892 = vld [vmem:[%s605 + $0x58] sm:$0xf]
        %v1893 = vld [vmem:[%s605 + $0x5c] sm:$0xf]
        %v1894 = vld [vmem:[%s605 + $0x60] sm:$0xf]
        %v1895 = vld [vmem:[%s605 + $0x64] sm:$0xf]
        %v1896 = vld [vmem:[%s605 + $0x68] sm:$0xf]
        %v1897 = vld [vmem:[%s605 + $0x6c] sm:$0xf]
        %v1898 = vld [vmem:[%s605 + $0x70] sm:$0xf]
        %v1899 = vld [vmem:[%s605 + $0x74] sm:$0xf]
        %v1900 = vld [vmem:[%s605 + $0x78] sm:$0xf]
        %v1901 = vld [vmem:[%s605 + $0x7c] sm:$0xf]
        %v1902 = vld [vmem:[%s716] sm:$0x1]
        %v1904 = vlaneseq
        %v1905 = vshrl.u32 %v1904, 7
        %v1906 = vsub.s32 0, %v1905
        %v1907 = vrot.slane %v1902, %v1906
        %v1941 = vunpack.c.l.b16 %v1870
        %v1942 = vunpack.c.l.b16 %v1871
        %v1943 = vunpack.c.l.b16 %v1872
        %v1944 = vunpack.c.l.b16 %v1873
        %v1945 = vunpack.c.l.b16 %v1874
        %v1946 = vunpack.c.l.b16 %v1875
        %v1947 = vunpack.c.l.b16 %v1876
        %v1948 = vunpack.c.l.b16 %v1877
        %v1949 = vunpack.c.l.b16 %v1878
        %v1950 = vunpack.c.l.b16 %v1879
        %v1951 = vunpack.c.l.b16 %v1880
        %v1952 = vunpack.c.l.b16 %v1881
        %v1953 = vunpack.c.l.b16 %v1882
        %v1954 = vunpack.c.l.b16 %v1883
        %v1955 = vunpack.c.l.b16 %v1884
        %v1956 = vunpack.c.l.b16 %v1885
        %v1957 = vunpack.c.l.b16 %v1886
        %v1958 = vunpack.c.l.b16 %v1887
        %v1959 = vunpack.c.l.b16 %v1888
        %v1960 = vunpack.c.l.b16 %v1889
        %v1961 = vunpack.c.l.b16 %v1890
        %v1962 = vunpack.c.l.b16 %v1891
        %v1963 = vunpack.c.l.b16 %v1892
        %v1964 = vunpack.c.l.b16 %v1893
        %v1965 = vunpack.c.l.b16 %v1894
        %v1966 = vunpack.c.l.b16 %v1895
        %v1967 = vunpack.c.l.b16 %v1896
        %v1968 = vunpack.c.l.b16 %v1897
        %v1969 = vunpack.c.l.b16 %v1898
        %v1970 = vunpack.c.l.b16 %v1899
        %v1971 = vunpack.c.l.b16 %v1900
        %v1972 = vunpack.c.l.b16 %v1901
        %v1973 = vpack.c.b16 %v1942, %v1941
        %v1974 = vpack.c.b16 %v1944, %v1943
        %v1975 = vpack.c.b16 %v1946, %v1945
        %v1976 = vpack.c.b16 %v1948, %v1947
        %v1977 = vpack.c.b16 %v1950, %v1949
        %v1978 = vpack.c.b16 %v1952, %v1951
        %v1979 = vpack.c.b16 %v1954, %v1953
        %v1980 = vpack.c.b16 %v1956, %v1955
        %v1981 = vpack.c.b16 %v1958, %v1957
        %v1982 = vpack.c.b16 %v1960, %v1959
        %v1983 = vpack.c.b16 %v1962, %v1961
        %v1984 = vpack.c.b16 %v1964, %v1963
        %v1985 = vpack.c.b16 %v1966, %v1965
        %v1986 = vpack.c.b16 %v1968, %v1967
        %v1987 = vpack.c.b16 %v1970, %v1969
        %v1988 = vpack.c.b16 %v1972, %v1971
        %2005 = vmatprep.subr.bf16.mxu0 0
        %2006 = vmatpush1.bf16.msra.mxu0 %v1980
        %2007 = vmatprep.subr.bf16.mxu0 0
        %2008 = vmatpush1.bf16.msra.mxu0 %v1979
        %2009 = vmatprep.subr.bf16.mxu0 0
        %2010 = vmatpush1.bf16.msra.mxu0 %v1978
        %2011 = vmatprep.subr.bf16.mxu0 0
        %2012 = vmatpush1.bf16.msra.mxu0 %v1977
        %2013 = vmatprep.subr.bf16.mxu0 0
        %2014 = vmatpush1.bf16.msra.mxu0 %v1976
        %2015 = vmatprep.subr.bf16.mxu0 0
        %2016 = vmatpush1.bf16.msra.mxu0 %v1975
        %2017 = vmatprep.subr.bf16.mxu0 0
        %2018 = vmatpush1.bf16.msra.mxu0 %v1974
        %2019 = vmatprep.subr.bf16.mxu0 0
        %2020 = vmatpush1.bf16.msra.mxu0 %v1973
        %2021 = vmatprep.subr.bf16.mxu0 0
        %2022 = vmatpush2.bf16.msra.mxu0 %v1988
        %2023 = vmatprep.subr.bf16.mxu0 0
        %2024 = vmatpush2.bf16.msra.mxu0 %v1987
        %2025 = vmatprep.subr.bf16.mxu0 0
        %2026 = vmatpush2.bf16.msra.mxu0 %v1986
        %2027 = vmatprep.subr.bf16.mxu0 0
        %2028 = vmatpush2.bf16.msra.mxu0 %v1985
        %2029 = vmatprep.subr.bf16.mxu0 0
        %2030 = vmatpush2.bf16.msra.mxu0 %v1984
        %2031 = vmatprep.subr.bf16.mxu0 0
        %2032 = vmatpush2.bf16.msra.mxu0 %v1983
        %2033 = vmatprep.subr.bf16.mxu0 0
        %2034 = vmatpush2.bf16.msra.mxu0 %v1982
        %2035 = vmatprep.subr.bf16.mxu0 0
        %2036 = vmatpush2.bf16.msra.mxu0 %v1981
        %2037 = vmatprep.mubr.bf16.mxu0 %v1869
        %2038 = vmatmul.mubr.bf16.gmra.mxu0 %v1868
        %v2039 = vpop.f32.mrf.mxu0
        %v2040 = vadd.f32 %v1907, %v2039
        %v2041 = vpop.f32.mrf.mxu0
        %v2042 = vpop.f32.mrf.mxu0
        %v2043 = vpop.f32.mrf.mxu0
        %2044 = vdwg.mxu0
        %v2045 = vadd.f32 %v2040, %v1715
        %v2046 = vld [vmem:[%s719] sm:$0x1]
        %v2047 = vld [vmem:[%s722] sm:$0x1]
        %2048 = vadd.xlane.f32.xlu0 %v2045
        %v2049 = vpop.xlane.xlu0 %2048
        %v2050 = vmul.f32 %v2049, %v1692
        %v2051 = vsub.f32 %v2045, %v2050
        %v2052 = vmul.f32 %v2051, %v2051
        %2053 = vadd.xlane.f32.xlu0 %v2052
        %v2054 = vpop.xlane.xlu0 %2053
        %v2055 = vmul.f32 %v2054, %v1692
        %v2056 = vadd.f32 %v2055, 1e-05
        %v2057 = vrsqrt.pop %v2056
        %v2058 = vmul.f32 %v2051, %v2057
        %v2060 = vlaneseq
        %v2061 = vshrl.u32 %v2060, 7
        %v2062 = vsub.s32 0, %v2061
        %v2063 = vrot.slane %v2046, %v2062
        %v2065 = vmul.f32 %v2058, %v2063
        %v2067 = vlaneseq
        %v2068 = vshrl.u32 %v2067, 7
        %v2069 = vsub.s32 0, %v2068
        %v2070 = vrot.slane %v2047, %v2069
        %v2072 = vadd.f32 %v2065, %v2070
        %2073 = vst [vmem:[#allocation2] sm:$0xff] %v2072
        %p2074 = scmp.eq.s32.totalorder %s41, 2
        // Predicated region
        $region93: #{music_encoder_forward.3} parent=71 // pred_check
          %p2075 = pneg %p2074
        $region94: #{music_encoder_forward.3} parent=71 // pred_check_branch
          %2077 = sbr.rel (%p2075) target = $region96
        $region95: #{music_encoder_forward.3} parent=71 // pred_region
          %2078 = vst [vmem:[%s692] sm:$0xff] %v2072
        $region96: #{music_encoder_forward.3} parent=71 // pred_fallthru
          _
        %s2079 = sand.u32 %s394, 1
        %s2080 = scalar_lea.sflag [#allocation5], %s2079
        %s2081 = sand.u32 %s394, 1
        %s2082 = smul.addr %s2081, 8
        %s2083 = scalar_lea.vmem [#allocation11], %s2082
        // Predicated region
        $region97: #{music_encoder_forward.3} parent=71 // pred_check
          %p2084 = pneg %p404
        $region98: #{music_encoder_forward.3} parent=71 // pred_check_branch
          %2086 = sbr.rel (%p2084) target = $region100
        $region99: #{music_encoder_forward.3} parent=71 // pred_region
          %s2088 = ssub.s32 128, 128
          %2089 = vsyncadd %s2080, %s2088
          %s2090 = smul.addr %s40, 128
          %s2091 = scalar_lea.hbm %s13, %s2090
          %s2093 = sshll.u32 %s2083, 4
          %s2094 = int_to_ptr.vmem [resolvable:$true] %s2093
          %2096 = dma.vmem_to_hbm [thread:$0]  %s2094, 128, %s2091, %s2080
        $region100: #{music_encoder_forward.3} parent=71 // pred_fallthru
          _
      $region72: #{music_encoder_forward.3} parent=5 // pred_fallthru
        _
      %p2097 = scmp.le.s32.totalorder 2, %s31
      // Predicated region
      $region101: #{music_encoder_forward.3} parent=5 // pred_check
        %p2098 = pneg %p2097
      $region102: #{music_encoder_forward.3} parent=5 // pred_check_branch
        %2100 = sbr.rel (%p2098) target = $region104
      $region103: #{music_encoder_forward.3} parent=5 // pred_region
        %s2101 = ssub.s32 %s31, 2
        // Predicated region
        $region105: #{music_encoder_forward.3} parent=103 // pred_check
          %p2102 = pneg %p410
        $region106: #{music_encoder_forward.3} parent=103 // pred_check_branch
          %2104 = sbr.rel (%p2102) target = $region108
        $region107: #{music_encoder_forward.3} parent=103 // pred_region
          %s2105 = sand.u32 %s395, 1
          %s2106 = scalar_lea.sflag [#allocation5], %s2105
          %s2107 = sand.u32 %s395, 1
          %s2108 = smul.addr %s2107, 8
          %s2109 = scalar_lea.vmem [#allocation11], %s2108
          %2110 = dma.done %s2106, 128
        $region108: #{music_encoder_forward.3} parent=103 // pred_fallthru
          _
      $region104: #{music_encoder_forward.3} parent=5 // pred_fallthru
        _
    $region6: #{music_encoder_forward.3} parent=1 // loop_footer
      %s35 = sadd.s32 1, %s31
    $region7: #{music_encoder_forward.3} parent=1 // loop_footer_branch
      %30 = sbr.rel target = $region3
    $region8: #{music_encoder_forward.3} parent=1 // loop_exit
      _
    %2111 = vsyncpa [#allocation4], 1
    %s2112 = scalar_lea.sflag [#allocation4], 1
    %2113 = vsyncpa %s2112, 1
    %2114 = vsyncpa [#allocation7], 1
    %s2115 = scalar_lea.sflag [#allocation7], 1
    %2116 = vsyncpa %s2115, 1
    %2117 = vsyncpa [#allocation10], 1
    %s2118 = scalar_lea.sflag [#allocation10], 1
    %2119 = vsyncpa %s2118, 1
    %2120 = vsyncpa [#allocation5], 1
    %s2121 = scalar_lea.sflag [#allocation5], 1
    %2122 = vsyncpa %s2121, 1

</llo_original>
